<compile_context>
chip_gen: v7x
topology: tpu7x:2x2x1
jax: 0.10.0
libtpu: 0.0.40
codegen_flags: <defaults>
</compile_context>

<pallas_src>
import functools

import jax
import jax.numpy as jnp
from jax import lax
from jax.experimental import pallas as pl
from jax.experimental.pallas import tpu as pltpu


def _attention_kernel(t0_ref, wv_ref, we_ref, enc_ref, g_ref, attn_ref, *, bt):
    # Batch-independent operands, hoisted out of the per-batch loop.
    t0 = t0_ref[...]      # (C, T) == (W0 @ E + b0[:, None] + bv).T
    wv = wv_ref[...]      # (C, C)
    we = we_ref[...]      # (L, C)

    # Short unrolled loop over the bt batches handled by this grid step.
    for b in range(bt):
        enc_ct = enc_ref[b]                                            # (C, T)

        # tT = tanh(t0T + Wv @ enc_ct)   (bv already folded into t0)
        tT = jnp.tanh(
            t0 + jnp.dot(wv, enc_ct, preferred_element_type=jnp.float32))  # (C, T)

        # scores = We @ tT -> (L, T); `be` omitted (softmax shift invariance).
        scores = jnp.dot(we, tT, preferred_element_type=jnp.float32)   # (L, T)

        # Numerically stable softmax over T (lane axis).
        m = jnp.max(scores, axis=-1, keepdims=True)
        e = jnp.exp(scores - m)
        s = jnp.sum(e, axis=-1, keepdims=True)
        attn = e * pl.reciprocal(s, approx=False)                      # (L, T)

        # g = attn @ enc -> (L, C): contract T of both operands (trans-B form).
        g = lax.dot_general(attn, enc_ct, (((1,), (1,)), ((), ())),
                            preferred_element_type=jnp.float32)        # (L, C)

        g_ref[b] = g.astype(g_ref.dtype)
        attn_ref[b] = attn.astype(attn_ref.dtype)


def _pick_batch_tile(B):
    """Batches per grid step: amortize per-step overhead, but keep >= 2 grid
    steps when possible so the 'parallel' batch axis can use both v7x cores."""
    if B <= 1:
        return 1
    target = min(8, max(1, B // 2))
    for bt in range(target, 0, -1):
        if B % bt == 0:
            return bt
    return 1


def attention_forward(x, params, max_length, n_feature):
    """x: (B, C, H, W) NCHW float32. Returns (g (B,L,C), attn (B,L,8,32))."""
    B, C, H, W = x.shape
    T = H * W
    assert T == n_feature, "module requires H*W == n_feature"
    assert T == 8 * 32, "module's final attn.view hardcodes (8, 32)"
    L = max_length

    # NCHW consumed directly: (B, C, H, W) -> (B, C, T) is a free reshape,
    # no HBM transpose pass before the kernel.
    enc_ct = x.reshape(B, C, T)

    E = params["emb_w"]                      # (L, C)  embedding table
    W0, b0 = params["w0_w"], params["w0_b"]  # (T, L), (T,)   nn.Linear(L, T)
    Wv, bv = params["wv_w"], params["wv_b"]  # (C, C), (C,)   nn.Linear(C, C)
    We = params["we_w"]                      # (L, C)          nn.Linear(C, L)
    # params["we_b"] intentionally unused: it is a per-L-row additive constant
    # before a softmax over T, so it affects neither attn nor g.

    # Batch-independent reading-order path with bv folded in, transposed to
    # the channel-major domain: (C, T).
    t0T = (W0 @ E + b0[:, None] + bv[None, :]).T

    Bt = _pick_batch_tile(B)
    nb = B // Bt

    kernel = functools.partial(_attention_kernel, bt=Bt)

    g, attn = pl.pallas_call(
        kernel,
        out_shape=(
            jax.ShapeDtypeStruct((B, L, C), jnp.float32),
            jax.ShapeDtypeStruct((B, L, T), jnp.float32),
        ),
        grid_spec=pltpu.PrefetchScalarGridSpec(
            num_scalar_prefetch=0,
            grid=(nb,),
            in_specs=[
                pl.BlockSpec((C, T), lambda i: (0, 0)),         # t0T (+bv)
                pl.BlockSpec((C, C), lambda i: (0, 0)),         # Wv
                pl.BlockSpec((L, C), lambda i: (0, 0)),         # We
                pl.BlockSpec((Bt, C, T), lambda i: (i, 0, 0)),  # enc (channel-major)
            ],
            out_specs=[
                pl.BlockSpec((Bt, L, C), lambda i: (i, 0, 0)),  # g
                pl.BlockSpec((Bt, L, T), lambda i: (i, 0, 0)),  # attn
            ],
        ),
        compiler_params=pltpu.CompilerParams(
            dimension_semantics=("parallel",)),
    )(t0T, Wv, We, enc_ct)

    return g, attn.reshape(B, L, 8, 32)


def attention_reference(x, params, max_length, n_feature):
    B, C, H, W = x.shape
    T = H * W
    L = max_length
    enc = jnp.transpose(x, (0, 2, 3, 1)).reshape(B, T, C)
    E = params["emb_w"]
    W0, b0 = params["w0_w"], params["w0_b"]
    Wv, bv = params["wv_w"], params["wv_b"]
    We, be = params["we_w"], params["we_b"]
    t0 = W0 @ E + b0[:, None]                                      # (T, C)
    t = jnp.tanh(t0[None] + enc @ Wv.T + bv)                       # (B, T, C)
    attn = t @ We.T + be                                           # (B, T, L)
    attn = jax.nn.softmax(jnp.transpose(attn, (0, 2, 1)), axis=2)  # (B, L, T)
    g = jnp.einsum("blt,btc->blc", attn, enc)
    return g, attn.reshape(B, L, 8, 32)


def init_params(key, in_channels, max_length, n_feature):
    C, L, T = in_channels, max_length, n_feature
    ks = jax.random.split(key, 7)

    def unif(k, shape, fan_in):
        bound = 1.0 / jnp.sqrt(fan_in)
        return jax.random.uniform(k, shape, jnp.float32, -bound, bound)

    return {
        "emb_w": jax.random.normal(ks[0], (L, C), jnp.float32),   # nn.Embedding(L, C)
        "w0_w": unif(ks[1], (T, L), L),                           # nn.Linear(L, T)
        "w0_b": unif(ks[2], (T,), L),
        "wv_w": unif(ks[3], (C, C), C),                           # nn.Linear(C, C)
        "wv_b": unif(ks[4], (C,), C),
        "we_w": unif(ks[5], (L, C), C),                           # nn.Linear(C, L)
        "we_b": unif(ks[6], (L,), C),
    }


if __name__ == "__main__":
    # Small config: in_channels=64, max_length=25, n_feature=256 (H=8, W=32 is
    # forced by the module's hardcoded attn.view(..., 8, 32)). B=8 exercises
    # the multi-batch-per-step path (Bt=4, grid=(2,)).
    B, C, H, W = 8, 64, 8, 32
    L, T = 25, H * W

    key = jax.random.PRNGKey(0)
    kx, kp = jax.random.split(key)
    x = jax.random.normal(kx, (B, C, H, W), jnp.float32)
    params = init_params(kp, C, L, T)

    g, attn = attention_forward(x, params, max_length=L, n_feature=T)
    jax.block_until_ready((g, attn))

    g_ref, attn_ref = attention_reference(x, params, max_length=L, n_feature=T)
    assert g.shape == (B, L, C) and attn.shape == (B, L, 8, 32)
    assert jnp.allclose(g, g_ref, atol=2e-4, rtol=1e-3)
    assert jnp.allclose(attn, attn_ref, atol=1e-4, rtol=1e-3)

    print("KERNEL_OK")
</pallas_src>

<mosaic_0001>
module attributes {stable_mosaic.version = 11 : i64} {
  func.func @_attention_kernel(%arg0: i32, %arg1: memref<64x256xf32, #tpu.memory_space<vmem>>, %arg2: memref<64x64xf32, #tpu.memory_space<vmem>>, %arg3: memref<25x64xf32, #tpu.memory_space<vmem>>, %arg4: memref<4x64x256xf32, #tpu.memory_space<vmem>>, %arg5: memref<4x25x64xf32, #tpu.memory_space<vmem>>, %arg6: memref<4x25x256xf32, #tpu.memory_space<vmem>>) attributes {dimension_semantics = [#tpu.dimension_semantics<parallel>], iteration_bounds = array<i64: 2>, scalar_prefetch = 0 : i64, scratch_operands = 0 : i64, tpu.core_type = #tpu.core_type<tc>, window_params = [{pipeline_mode = #tpu.pipeline_mode<synchronous>, transform_indices = @transform_0, window_bounds = array<i64: 64, 256>}, {pipeline_mode = #tpu.pipeline_mode<synchronous>, transform_indices = @transform_1, window_bounds = array<i64: 64, 64>}, {pipeline_mode = #tpu.pipeline_mode<synchronous>, transform_indices = @transform_2, window_bounds = array<i64: 25, 64>}, {transform_indices = @transform_3, window_bounds = array<i64: 4, 64, 256>}, {transform_indices = @transform_4, window_bounds = array<i64: 4, 25, 64>}, {transform_indices = @transform_5, window_bounds = array<i64: 4, 25, 256>}]} {
    %c0 = arith.constant 0 : index
    %c0_0 = arith.constant 0 : index
    %0 = vector.load %arg1[%c0, %c0_0] : memref<64x256xf32, #tpu.memory_space<vmem>>, vector<64x256xf32>
    %c0_1 = arith.constant 0 : index
    %c0_2 = arith.constant 0 : index
    %1 = vector.load %arg2[%c0_1, %c0_2] : memref<64x64xf32, #tpu.memory_space<vmem>>, vector<64x64xf32>
    %c0_3 = arith.constant 0 : index
    %c0_4 = arith.constant 0 : index
    %2 = vector.load %arg3[%c0_3, %c0_4] : memref<25x64xf32, #tpu.memory_space<vmem>>, vector<25x64xf32>
    %c0_5 = arith.constant 0 : index
    %c0_6 = arith.constant 0 : index
    %c0_7 = arith.constant 0 : index
    %3 = vector.load %arg4[%c0_5, %c0_6, %c0_7] : memref<4x64x256xf32, #tpu.memory_space<vmem>>, vector<1x64x256xf32>
    %4 = vector.shape_cast %3 : vector<1x64x256xf32> to vector<64x256xf32>
    %cst = arith.constant dense<0.000000e+00> : vector<64x256xf32>
    %5 = tpu.matmul %1, %4, %cst {dimension_numbers = #tpu.dot_dimension_numbers<[1], [0], [0], [1], [0, 0, 1, 1], [], []>} : vector<64x64xf32>, vector<64x256xf32>, vector<64x256xf32> -> vector<64x256xf32>
    %6 = arith.addf %0, %5 : vector<64x256xf32>
    %7 = math.tanh %6 : vector<64x256xf32>
    %cst_8 = arith.constant dense<0.000000e+00> : vector<25x256xf32>
    %8 = tpu.matmul %2, %7, %cst_8 {dimension_numbers = #tpu.dot_dimension_numbers<[1], [0], [0], [1], [0, 0, 1, 1], [], []>} : vector<25x64xf32>, vector<64x256xf32>, vector<25x256xf32> -> vector<25x256xf32>
    %cst_9 = arith.constant dense<0xFF800000> : vector<25xf32>
    %9 = vector.multi_reduction <maximumf>, %8, %cst_9 [1] : vector<25x256xf32> to vector<25xf32>
    %10 = vector.shape_cast %9 : vector<25xf32> to vector<25x1xf32>
    %11 = vector.broadcast %10 : vector<25x1xf32> to vector<25x256xf32>
    %12 = arith.subf %8, %11 : vector<25x256xf32>
    %13 = math.exp %12 : vector<25x256xf32>
    %cst_10 = arith.constant dense<0.000000e+00> : vector<25xf32>
    %14 = vector.multi_reduction <add>, %13, %cst_10 [1] : vector<25x256xf32> to vector<25xf32>
    %15 = vector.shape_cast %14 : vector<25xf32> to vector<25x1xf32>
    %16 = tpu.reciprocal %15 : vector<25x1xf32> -> vector<25x1xf32>
    %17 = vector.broadcast %16 : vector<25x1xf32> to vector<25x256xf32>
    %18 = arith.mulf %13, %17 : vector<25x256xf32>
    %cst_11 = arith.constant dense<0.000000e+00> : vector<25x64xf32>
    %19 = tpu.matmul %18, %4, %cst_11 {dimension_numbers = #tpu.dot_dimension_numbers<[1], [1], [0], [0], [0, 0, 1, 0], [], []>} : vector<25x256xf32>, vector<64x256xf32>, vector<25x64xf32> -> vector<25x64xf32>
    %c0_12 = arith.constant 0 : index
    %c0_13 = arith.constant 0 : index
    %c0_14 = arith.constant 0 : index
    %20 = vector.load %arg5[%c0_12, %c0_13, %c0_14] : memref<4x25x64xf32, #tpu.memory_space<vmem>>, vector<1x25x64xf32>
    %21 = vector.shape_cast %20 : vector<1x25x64xf32> to vector<25x64xf32>
    %22 = vector.shape_cast %19 : vector<25x64xf32> to vector<1x25x64xf32>
    tpu.vector_store %arg5[%c0_12, %c0_13, %c0_14], %22 {strides = array<i32>} : memref<4x25x64xf32, #tpu.memory_space<vmem>>, vector<1x25x64xf32>,
    %c0_15 = arith.constant 0 : index
    %c0_16 = arith.constant 0 : index
    %c0_17 = arith.constant 0 : index
    %23 = vector.load %arg6[%c0_15, %c0_16, %c0_17] : memref<4x25x256xf32, #tpu.memory_space<vmem>>, vector<1x25x256xf32>
    %24 = vector.shape_cast %23 : vector<1x25x256xf32> to vector<25x256xf32>
    %25 = vector.shape_cast %18 : vector<25x256xf32> to vector<1x25x256xf32>
    tpu.vector_store %arg6[%c0_15, %c0_16, %c0_17], %25 {strides = array<i32>} : memref<4x25x256xf32, #tpu.memory_space<vmem>>, vector<1x25x256xf32>,
    %c1 = arith.constant 1 : index
    %c0_18 = arith.constant 0 : index
    %c0_19 = arith.constant 0 : index
    %26 = vector.load %arg4[%c1, %c0_18, %c0_19] : memref<4x64x256xf32, #tpu.memory_space<vmem>>, vector<1x64x256xf32>
    %27 = vector.shape_cast %26 : vector<1x64x256xf32> to vector<64x256xf32>
    %cst_20 = arith.constant dense<0.000000e+00> : vector<64x256xf32>
    %28 = tpu.matmul %1, %27, %cst_20 {dimension_numbers = #tpu.dot_dimension_numbers<[1], [0], [0], [1], [0, 0, 1, 1], [], []>} : vector<64x64xf32>, vector<64x256xf32>, vector<64x256xf32> -> vector<64x256xf32>
    %29 = arith.addf %0, %28 : vector<64x256xf32>
    %30 = math.tanh %29 : vector<64x256xf32>
    %cst_21 = arith.constant dense<0.000000e+00> : vector<25x256xf32>
    %31 = tpu.matmul %2, %30, %cst_21 {dimension_numbers = #tpu.dot_dimension_numbers<[1], [0], [0], [1], [0, 0, 1, 1], [], []>} : vector<25x64xf32>, vector<64x256xf32>, vector<25x256xf32> -> vector<25x256xf32>
    %cst_22 = arith.constant dense<0xFF800000> : vector<25xf32>
    %32 = vector.multi_reduction <maximumf>, %31, %cst_22 [1] : vector<25x256xf32> to vector<25xf32>
    %33 = vector.shape_cast %32 : vector<25xf32> to vector<25x1xf32>
    %34 = vector.broadcast %33 : vector<25x1xf32> to vector<25x256xf32>
    %35 = arith.subf %31, %34 : vector<25x256xf32>
    %36 = math.exp %35 : vector<25x256xf32>
    %cst_23 = arith.constant dense<0.000000e+00> : vector<25xf32>
    %37 = vector.multi_reduction <add>, %36, %cst_23 [1] : vector<25x256xf32> to vector<25xf32>
    %38 = vector.shape_cast %37 : vector<25xf32> to vector<25x1xf32>
    %39 = tpu.reciprocal %38 : vector<25x1xf32> -> vector<25x1xf32>
    %40 = vector.broadcast %39 : vector<25x1xf32> to vector<25x256xf32>
    %41 = arith.mulf %36, %40 : vector<25x256xf32>
    %cst_24 = arith.constant dense<0.000000e+00> : vector<25x64xf32>
    %42 = tpu.matmul %41, %27, %cst_24 {dimension_numbers = #tpu.dot_dimension_numbers<[1], [1], [0], [0], [0, 0, 1, 0], [], []>} : vector<25x256xf32>, vector<64x256xf32>, vector<25x64xf32> -> vector<25x64xf32>
    %c1_25 = arith.constant 1 : index
    %c0_26 = arith.constant 0 : index
    %c0_27 = arith.constant 0 : index
    %43 = vector.load %arg5[%c1_25, %c0_26, %c0_27] : memref<4x25x64xf32, #tpu.memory_space<vmem>>, vector<1x25x64xf32>
    %44 = vector.shape_cast %43 : vector<1x25x64xf32> to vector<25x64xf32>
    %45 = vector.shape_cast %42 : vector<25x64xf32> to vector<1x25x64xf32>
    tpu.vector_store %arg5[%c1_25, %c0_26, %c0_27], %45 {strides = array<i32>} : memref<4x25x64xf32, #tpu.memory_space<vmem>>, vector<1x25x64xf32>,
    %c1_28 = arith.constant 1 : index
    %c0_29 = arith.constant 0 : index
    %c0_30 = arith.constant 0 : index
    %46 = vector.load %arg6[%c1_28, %c0_29, %c0_30] : memref<4x25x256xf32, #tpu.memory_space<vmem>>, vector<1x25x256xf32>
    %47 = vector.shape_cast %46 : vector<1x25x256xf32> to vector<25x256xf32>
    %48 = vector.shape_cast %41 : vector<25x256xf32> to vector<1x25x256xf32>
    tpu.vector_store %arg6[%c1_28, %c0_29, %c0_30], %48 {strides = array<i32>} : memref<4x25x256xf32, #tpu.memory_space<vmem>>, vector<1x25x256xf32>,
    %c2 = arith.constant 2 : index
    %c0_31 = arith.constant 0 : index
    %c0_32 = arith.constant 0 : index
    %49 = vector.load %arg4[%c2, %c0_31, %c0_32] : memref<4x64x256xf32, #tpu.memory_space<vmem>>, vector<1x64x256xf32>
    %50 = vector.shape_cast %49 : vector<1x64x256xf32> to vector<64x256xf32>
    %cst_33 = arith.constant dense<0.000000e+00> : vector<64x256xf32>
    %51 = tpu.matmul %1, %50, %cst_33 {dimension_numbers = #tpu.dot_dimension_numbers<[1], [0], [0], [1], [0, 0, 1, 1], [], []>} : vector<64x64xf32>, vector<64x256xf32>, vector<64x256xf32> -> vector<64x256xf32>
    %52 = arith.addf %0, %51 : vector<64x256xf32>
    %53 = math.tanh %52 : vector<64x256xf32>
    %cst_34 = arith.constant dense<0.000000e+00> : vector<25x256xf32>
    %54 = tpu.matmul %2, %53, %cst_34 {dimension_numbers = #tpu.dot_dimension_numbers<[1], [0], [0], [1], [0, 0, 1, 1], [], []>} : vector<25x64xf32>, vector<64x256xf32>, vector<25x256xf32> -> vector<25x256xf32>
    %cst_35 = arith.constant dense<0xFF800000> : vector<25xf32>
    %55 = vector.multi_reduction <maximumf>, %54, %cst_35 [1] : vector<25x256xf32> to vector<25xf32>
    %56 = vector.shape_cast %55 : vector<25xf32> to vector<25x1xf32>
    %57 = vector.broadcast %56 : vector<25x1xf32> to vector<25x256xf32>
    %58 = arith.subf %54, %57 : vector<25x256xf32>
    %59 = math.exp %58 : vector<25x256xf32>
    %cst_36 = arith.constant dense<0.000000e+00> : vector<25xf32>
    %60 = vector.multi_reduction <add>, %59, %cst_36 [1] : vector<25x256xf32> to vector<25xf32>
    %61 = vector.shape_cast %60 : vector<25xf32> to vector<25x1xf32>
    %62 = tpu.reciprocal %61 : vector<25x1xf32> -> vector<25x1xf32>
    %63 = vector.broadcast %62 : vector<25x1xf32> to vector<25x256xf32>
    %64 = arith.mulf %59, %63 : vector<25x256xf32>
    %cst_37 = arith.constant dense<0.000000e+00> : vector<25x64xf32>
    %65 = tpu.matmul %64, %50, %cst_37 {dimension_numbers = #tpu.dot_dimension_numbers<[1], [1], [0], [0], [0, 0, 1, 0], [], []>} : vector<25x256xf32>, vector<64x256xf32>, vector<25x64xf32> -> vector<25x64xf32>
    %c2_38 = arith.constant 2 : index
    %c0_39 = arith.constant 0 : index
    %c0_40 = arith.constant 0 : index
    %66 = vector.load %arg5[%c2_38, %c0_39, %c0_40] : memref<4x25x64xf32, #tpu.memory_space<vmem>>, vector<1x25x64xf32>
    %67 = vector.shape_cast %66 : vector<1x25x64xf32> to vector<25x64xf32>
    %68 = vector.shape_cast %65 : vector<25x64xf32> to vector<1x25x64xf32>
    tpu.vector_store %arg5[%c2_38, %c0_39, %c0_40], %68 {strides = array<i32>} : memref<4x25x64xf32, #tpu.memory_space<vmem>>, vector<1x25x64xf32>,
    %c2_41 = arith.constant 2 : index
    %c0_42 = arith.constant 0 : index
    %c0_43 = arith.constant 0 : index
    %69 = vector.load %arg6[%c2_41, %c0_42, %c0_43] : memref<4x25x256xf32, #tpu.memory_space<vmem>>, vector<1x25x256xf32>
    %70 = vector.shape_cast %69 : vector<1x25x256xf32> to vector<25x256xf32>
    %71 = vector.shape_cast %64 : vector<25x256xf32> to vector<1x25x256xf32>
    tpu.vector_store %arg6[%c2_41, %c0_42, %c0_43], %71 {strides = array<i32>} : memref<4x25x256xf32, #tpu.memory_space<vmem>>, vector<1x25x256xf32>,
    %c3 = arith.constant 3 : index
    %c0_44 = arith.constant 0 : index
    %c0_45 = arith.constant 0 : index
    %72 = vector.load %arg4[%c3, %c0_44, %c0_45] : memref<4x64x256xf32, #tpu.memory_space<vmem>>, vector<1x64x256xf32>
    %73 = vector.shape_cast %72 : vector<1x64x256xf32> to vector<64x256xf32>
    %cst_46 = arith.constant dense<0.000000e+00> : vector<64x256xf32>
    %74 = tpu.matmul %1, %73, %cst_46 {dimension_numbers = #tpu.dot_dimension_numbers<[1], [0], [0], [1], [0, 0, 1, 1], [], []>} : vector<64x64xf32>, vector<64x256xf32>, vector<64x256xf32> -> vector<64x256xf32>
    %75 = arith.addf %0, %74 : vector<64x256xf32>
    %76 = math.tanh %75 : vector<64x256xf32>
    %cst_47 = arith.constant dense<0.000000e+00> : vector<25x256xf32>
    %77 = tpu.matmul %2, %76, %cst_47 {dimension_numbers = #tpu.dot_dimension_numbers<[1], [0], [0], [1], [0, 0, 1, 1], [], []>} : vector<25x64xf32>, vector<64x256xf32>, vector<25x256xf32> -> vector<25x256xf32>
    %cst_48 = arith.constant dense<0xFF800000> : vector<25xf32>
    %78 = vector.multi_reduction <maximumf>, %77, %cst_48 [1] : vector<25x256xf32> to vector<25xf32>
    %79 = vector.shape_cast %78 : vector<25xf32> to vector<25x1xf32>
    %80 = vector.broadcast %79 : vector<25x1xf32> to vector<25x256xf32>
    %81 = arith.subf %77, %80 : vector<25x256xf32>
    %82 = math.exp %81 : vector<25x256xf32>
    %cst_49 = arith.constant dense<0.000000e+00> : vector<25xf32>
    %83 = vector.multi_reduction <add>, %82, %cst_49 [1] : vector<25x256xf32> to vector<25xf32>
    %84 = vector.shape_cast %83 : vector<25xf32> to vector<25x1xf32>
    %85 = tpu.reciprocal %84 : vector<25x1xf32> -> vector<25x1xf32>
    %86 = vector.broadcast %85 : vector<25x1xf32> to vector<25x256xf32>
    %87 = arith.mulf %82, %86 : vector<25x256xf32>
    %cst_50 = arith.constant dense<0.000000e+00> : vector<25x64xf32>
    %88 = tpu.matmul %87, %73, %cst_50 {dimension_numbers = #tpu.dot_dimension_numbers<[1], [1], [0], [0], [0, 0, 1, 0], [], []>} : vector<25x256xf32>, vector<64x256xf32>, vector<25x64xf32> -> vector<25x64xf32>
    %c3_51 = arith.constant 3 : index
    %c0_52 = arith.constant 0 : index
    %c0_53 = arith.constant 0 : index
    %89 = vector.load %arg5[%c3_51, %c0_52, %c0_53] : memref<4x25x64xf32, #tpu.memory_space<vmem>>, vector<1x25x64xf32>
    %90 = vector.shape_cast %89 : vector<1x25x64xf32> to vector<25x64xf32>
    %91 = vector.shape_cast %88 : vector<25x64xf32> to vector<1x25x64xf32>
    tpu.vector_store %arg5[%c3_51, %c0_52, %c0_53], %91 {strides = array<i32>} : memref<4x25x64xf32, #tpu.memory_space<vmem>>, vector<1x25x64xf32>,
    %c3_54 = arith.constant 3 : index
    %c0_55 = arith.constant 0 : index
    %c0_56 = arith.constant 0 : index
    %92 = vector.load %arg6[%c3_54, %c0_55, %c0_56] : memref<4x25x256xf32, #tpu.memory_space<vmem>>, vector<1x25x256xf32>
    %93 = vector.shape_cast %92 : vector<1x25x256xf32> to vector<25x256xf32>
    %94 = vector.shape_cast %87 : vector<25x256xf32> to vector<1x25x256xf32>
    tpu.vector_store %arg6[%c3_54, %c0_55, %c0_56], %94 {strides = array<i32>} : memref<4x25x256xf32, #tpu.memory_space<vmem>>, vector<1x25x256xf32>,
    return
  }
  func.func @transform_0(%arg0: i32) -> (i32, i32) {
    %c0_i32 = arith.constant 0 : i32
    %c0_i32_0 = arith.constant 0 : i32
    %c0_i32_1 = arith.constant 0 : i32
    return %c0_i32, %c0_i32_0 : i32, i32
  }
  func.func @transform_1(%arg0: i32) -> (i32, i32) {
    %c0_i32 = arith.constant 0 : i32
    %c0_i32_0 = arith.constant 0 : i32
    %c0_i32_1 = arith.constant 0 : i32
    return %c0_i32, %c0_i32_0 : i32, i32
  }
  func.func @transform_2(%arg0: i32) -> (i32, i32) {
    %c0_i32 = arith.constant 0 : i32
    %c0_i32_0 = arith.constant 0 : i32
    %c0_i32_1 = arith.constant 0 : i32
    return %c0_i32, %c0_i32_0 : i32, i32
  }
  func.func @transform_3(%arg0: i32) -> (i32, i32, i32) {
    %c0_i32 = arith.constant 0 : i32
    %c0_i32_0 = arith.constant 0 : i32
    %c0_i32_1 = arith.constant 0 : i32
    return %arg0, %c0_i32, %c0_i32_0 : i32, i32, i32
  }
  func.func @transform_4(%arg0: i32) -> (i32, i32, i32) {
    %c0_i32 = arith.constant 0 : i32
    %c0_i32_0 = arith.constant 0 : i32
    %c0_i32_1 = arith.constant 0 : i32
    return %arg0, %c0_i32, %c0_i32_0 : i32, i32, i32
  }
  func.func @transform_5(%arg0: i32) -> (i32, i32, i32) {
    %c0_i32 = arith.constant 0 : i32
    %c0_i32_0 = arith.constant 0 : i32
    %c0_i32_1 = arith.constant 0 : i32
    return %arg0, %c0_i32, %c0_i32_0 : i32, i32, i32
  }
}

</mosaic_0001>

<llo_original>
// kernel: tpu_custom_call.1
$region0: #{tpu_custom_call.1}
  #allocation0 [shape = 'u32[]', space=smem, size = 0x4, offset = 0x4, fixed_abs, tag = 'smem constant byte address 0x4 - core index']
  #allocation1 [shape = 'u32[144,128]{1,0:T(1,128)}', space=vmem, size = 0x12000, scoped, tag = 'internal scratch']
  %s0 = inlined_call_operand.hbm [shape: f32[64,256], index: 0, kind: input, shape index: {}]
  %s1 = inlined_call_operand.hbm [shape: f32[64,64], index: 1, kind: input, shape index: {}]
  %s2 = inlined_call_operand.hbm [shape: f32[25,64], index: 2, kind: input, shape index: {}]
  %s3 = inlined_call_operand.hbm [shape: f32[8,64,256], index: 3, kind: input, shape index: {}]
  %s4 = inlined_call_operand.vmem [shape: f32[8,25,64], index: 4, kind: output, shape index: {0}]
  %s5 = inlined_call_operand.vmem [shape: f32[8,25,256], index: 5, kind: output, shape index: {1}]
  %6 = xla_tuple %s4, %s5
  %s7 = sld [smem:[#allocation0]]
  $region73: #{tpu_custom_call.1} parent=0
    _
  %s9 = ssub.s32 1, %s7
  %s10 = scalar_select 0, %s9, %s7
  $region1: #{tpu_custom_call.1} parent=0
    #allocation2 [shape = 'u8[65536]{0}', space=vmem, size = 0x10000, scoped, tag = 'input window, operand 0, single buffered']
    #allocation3 [shape = 's32[2]{0}', space=sflag, size = 0x8, scoped, tag = 'scoped memory for tpu_custom_call.1']
    #allocation4 [shape = 'u8[32768]{0}', space=vmem, size = 0x8000, scoped, tag = 'input window, operand 1, single buffered']
    #allocation5 [shape = 's32[1]{0}', space=sflag, size = 0x4, scoped, tag = 'scoped memory for tpu_custom_call.1']
    #allocation6 [shape = 'u8[16384]{0}', space=vmem, size = 0x4000, scoped, tag = 'input window, operand 2, single buffered']
    #allocation7 [shape = 'u8[524288]{0}', space=vmem, size = 0x80000, scoped, tag = 'input window, operand 3']
    #allocation8 [shape = 's32[2]{0}', space=sflag, size = 0x8, scoped, tag = 'scoped memory for tpu_custom_call.1']
    %11 = vsyncpa [#allocation3], 0
    %12 = vsyncpa [#allocation5], 0
    %13 = vsyncpa [#allocation8], 0
    %s14 = scalar_lea.sflag [#allocation8], 1
    %15 = vsyncpa %s14, 0
    loop: start=0, step=1, limit=4
    $region2: #{tpu_custom_call.1} parent=1 // loop_pre_header
      _
    $region3: #{tpu_custom_call.1} parent=1 // loop_header
      %s17 = sphi 0, %s21
      %p18 = scmp.ge.s32.totalorder %s17, 4
      %s25 = sphi 0, %s25
      %s27 = sphi 0, %s25
      %s28 = sphi 0, %s27
      %s42 = sphi 0, %s28
      %s46 = sphi 0, %s46
      %s48 = sphi 0, %s46
      %s49 = sphi 0, %s48
      %s63 = sphi 0, %s49
      %s67 = sphi 0, %s67
      %s69 = sphi 0, %s67
      %s70 = sphi 0, %s69
      %s84 = sphi 0, %s70
      %s90 = sphi 0, %s92
      %s93 = sphi 0, %s90
      %s94 = sphi 0, %s93
      %s110 = sphi 0, %s94
      %s116 = sphi 0, %s118
      %s119 = sphi 0, %s116
      %s120 = sphi 0, %s119
      %s136 = sphi 0, %s120
      %s142 = sphi 0, %s144
      %s145 = sphi 0, %s142
      %s146 = sphi 0, %s145
      %s162 = sphi 0, %s146
    $region4: #{tpu_custom_call.1} parent=1 // loop_header_branch
      %20 = sbr.rel (%p18) target = $region8
    $region5: #{tpu_custom_call.1} parent=1 // loop_body
      %s22 = ssub.s32 %s17, 1
      %s23 = ssub.s32 %s17, 2
      %s24 = sadd.s32 %s17, 1
      %s26 = sadd.s32 %s25, 1
      %p29 = scmp.eq.s32.totalorder %s17, 1
      %p30 = scmp.ne.s32.totalorder %s25, %s27
      %p31 = scmp.eq.s32.totalorder %s17, 0
      %p32 = por %p30, %p31
      %p33 = scmp.ne.s32.totalorder %s25, %s27
      %p34 = scmp.eq.s32.totalorder %s22, 1
      %p35 = por %p33, %p34
      %p36 = scmp.ne.s32.totalorder %s27, %s28
      %p37 = scmp.eq.s32.totalorder %s22, 0
      %p38 = por %p36, %p37
      %p39 = scmp.ne.s32.totalorder %s27, %s28
      %p40 = scmp.eq.s32.totalorder %s23, 1
      %p41 = por %p39, %p40
      %p43 = scmp.ne.s32.totalorder %s28, %s42
      %p44 = scmp.eq.s32.totalorder %s23, 0
      %p45 = por %p43, %p44
      %s47 = sadd.s32 %s46, 1
      %p50 = scmp.eq.s32.totalorder %s17, 1
      %p51 = scmp.ne.s32.totalorder %s46, %s48
      %p52 = scmp.eq.s32.totalorder %s17, 0
      %p53 = por %p51, %p52
      %p54 = scmp.ne.s32.totalorder %s46, %s48
      %p55 = scmp.eq.s32.totalorder %s22, 1
      %p56 = por %p54, %p55
      %p57 = scmp.ne.s32.totalorder %s48, %s49
      %p58 = scmp.eq.s32.totalorder %s22, 0
      %p59 = por %p57, %p58
      %p60 = scmp.ne.s32.totalorder %s48, %s49
      %p61 = scmp.eq.s32.totalorder %s23, 1
      %p62 = por %p60, %p61
      %p64 = scmp.ne.s32.totalorder %s49, %s63
      %p65 = scmp.eq.s32.totalorder %s23, 0
      %p66 = por %p64, %p65
      %s68 = sadd.s32 %s67, 1
      %p71 = scmp.eq.s32.totalorder %s17, 1
      %p72 = scmp.ne.s32.totalorder %s67, %s69
      %p73 = scmp.eq.s32.totalorder %s17, 0
      %p74 = por %p72, %p73
      %p75 = scmp.ne.s32.totalorder %s67, %s69
      %p76 = scmp.eq.s32.totalorder %s22, 1
      %p77 = por %p75, %p76
      %p78 = scmp.ne.s32.totalorder %s69, %s70
      %p79 = scmp.eq.s32.totalorder %s22, 0
      %p80 = por %p78, %p79
      %p81 = scmp.ne.s32.totalorder %s69, %s70
      %p82 = scmp.eq.s32.totalorder %s23, 1
      %p83 = por %p81, %p82
      %p85 = scmp.ne.s32.totalorder %s70, %s84
      %p86 = scmp.eq.s32.totalorder %s23, 0
      %p87 = por %p85, %p86
      %s88 = ssub.s32 %s17, %s24
      %p89 = scmp.eq.s32.totalorder %s88, 0
      %s91 = sadd.s32 %s90, 1
      %s92 = scalar_select %p89, %s90, %s91
      %p95 = pneg %p89
      %p96 = scmp.eq.s32.totalorder %s17, 1
      %p97 = por %p95, %p96
      %p98 = scmp.ne.s32.totalorder %s90, %s93
      %p99 = scmp.eq.s32.totalorder %s17, 0
      %p100 = por %p98, %p99
      %p101 = scmp.ne.s32.totalorder %s90, %s93
      %p102 = scmp.eq.s32.totalorder %s22, 1
      %p103 = por %p101, %p102
      %p104 = scmp.ne.s32.totalorder %s93, %s94
      %p105 = scmp.eq.s32.totalorder %s22, 0
      %p106 = por %p104, %p105
      %p107 = scmp.ne.s32.totalorder %s93, %s94
      %p108 = scmp.eq.s32.totalorder %s23, 1
      %p109 = por %p107, %p108
      %p111 = scmp.ne.s32.totalorder %s94, %s110
      %p112 = scmp.eq.s32.totalorder %s23, 0
      %p113 = por %p111, %p112
      %s114 = ssub.s32 %s17, %s24
      %p115 = scmp.eq.s32.totalorder %s114, 0
      %s117 = sadd.s32 %s116, 1
      %s118 = scalar_select %p115, %s116, %s117
      %p121 = pneg %p115
      %p122 = scmp.eq.s32.totalorder %s17, 1
      %p123 = por %p121, %p122
      %p124 = scmp.ne.s32.totalorder %s116, %s119
      %p125 = scmp.eq.s32.totalorder %s17, 0
      %p126 = por %p124, %p125
      %p127 = scmp.ne.s32.totalorder %s116, %s119
      %p128 = scmp.eq.s32.totalorder %s22, 1
      %p129 = por %p127, %p128
      %p130 = scmp.ne.s32.totalorder %s119, %s120
      %p131 = scmp.eq.s32.totalorder %s22, 0
      %p132 = por %p130, %p131
      %p133 = scmp.ne.s32.totalorder %s119, %s120
      %p134 = scmp.eq.s32.totalorder %s23, 1
      %p135 = por %p133, %p134
      %p137 = scmp.ne.s32.totalorder %s120, %s136
      %p138 = scmp.eq.s32.totalorder %s23, 0
      %p139 = por %p137, %p138
      %s140 = ssub.s32 %s17, %s24
      %p141 = scmp.eq.s32.totalorder %s140, 0
      %s143 = sadd.s32 %s142, 1
      %s144 = scalar_select %p141, %s142, %s143
      %p147 = pneg %p141
      %p148 = scmp.eq.s32.totalorder %s17, 1
      %p149 = por %p147, %p148
      %p150 = scmp.ne.s32.totalorder %s142, %s145
      %p151 = scmp.eq.s32.totalorder %s17, 0
      %p152 = por %p150, %p151
      %p153 = scmp.ne.s32.totalorder %s142, %s145
      %p154 = scmp.eq.s32.totalorder %s22, 1
      %p155 = por %p153, %p154
      %p156 = scmp.ne.s32.totalorder %s145, %s146
      %p157 = scmp.eq.s32.totalorder %s22, 0
      %p158 = por %p156, %p157
      %p159 = scmp.ne.s32.totalorder %s145, %s146
      %p160 = scmp.eq.s32.totalorder %s23, 1
      %p161 = por %p159, %p160
      %p163 = scmp.ne.s32.totalorder %s146, %s162
      %p164 = scmp.eq.s32.totalorder %s23, 0
      %p165 = por %p163, %p164
      %p166 = scmp.le.s32.totalorder 1, %s17
      %p167 = scmp.lt.s32.totalorder %s17, 3
      %p168 = pnand %p166, %p167
      %p169 = pneg %p168
      // Predicated region
      $region9: #{tpu_custom_call.1} parent=5 // pred_check
        _
      $region10: #{tpu_custom_call.1} parent=5 // pred_check_branch
        %171 = sbr.rel (%p168) target = $region12
      $region11: #{tpu_custom_call.1} parent=5 // pred_region
        %s172 = ssub.s32 %s17, 1
        // Predicated region
        $region13: #{tpu_custom_call.1} parent=11 // pred_check
          %p173 = pneg %p38
        $region14: #{tpu_custom_call.1} parent=11 // pred_check_branch
          %175 = sbr.rel (%p173) target = $region16
        $region15: #{tpu_custom_call.1} parent=11 // pred_region
          %s177 = ssub.s32 2048, 2048
          %178 = vsyncadd [#allocation3], %s177
          %s179 = sshll.u32 [#allocation2], 4
          %s180 = int_to_ptr.vmem [resolvable:$true] %s179
          %185 = dma.hbm_to_vmem [thread:$0]  %s0, 2048, %s180, [#allocation3], 256, 256, 16
        $region16: #{tpu_custom_call.1} parent=11 // pred_fallthru
          _
        // Predicated region
        $region17: #{tpu_custom_call.1} parent=11 // pred_check
          %p186 = pneg %p59
        $region18: #{tpu_custom_call.1} parent=11 // pred_check_branch
          %188 = sbr.rel (%p186) target = $region20
        $region19: #{tpu_custom_call.1} parent=11 // pred_region
          %s190 = ssub.s32 1024, 1024
          %191 = vsyncadd [#allocation5], %s190
          %s192 = sshll.u32 [#allocation4], 4
          %s193 = int_to_ptr.vmem [resolvable:$true] %s192
          %198 = dma.hbm_to_vmem [thread:$0]  %s1, 1024, %s193, [#allocation5], 128, 128, 8
        $region20: #{tpu_custom_call.1} parent=11 // pred_fallthru
          _
        // Predicated region
        $region21: #{tpu_custom_call.1} parent=11 // pred_check
          %p199 = pneg %p80
        $region22: #{tpu_custom_call.1} parent=11 // pred_check_branch
          %201 = sbr.rel (%p199) target = $region24
        $region23: #{tpu_custom_call.1} parent=11 // pred_region
          %s203 = ssub.s32 512, 512
          %204 = vsyncadd [#allocation5], %s203
          %s205 = sshll.u32 [#allocation6], 4
          %s206 = int_to_ptr.vmem [resolvable:$true] %s205
          %211 = dma.hbm_to_vmem [thread:$0]  %s2, 512, %s206, [#allocation5], 128, 128, 8
        $region24: #{tpu_custom_call.1} parent=11 // pred_fallthru
          _
      $region12: #{tpu_custom_call.1} parent=5 // pred_fallthru
        _
      %p212 = scmp.lt.s32.totalorder %s17, 2
      // Predicated region
      $region25: #{tpu_custom_call.1} parent=5 // pred_check
        %p213 = pneg %p212
      $region26: #{tpu_custom_call.1} parent=5 // pred_check_branch
        %215 = sbr.rel (%p213) target = $region28
      $region27: #{tpu_custom_call.1} parent=5 // pred_region
        // Predicated region
        $region29: #{tpu_custom_call.1} parent=27 // pred_check
          %p216 = pneg %p100
        $region30: #{tpu_custom_call.1} parent=27 // pred_check_branch
          %218 = sbr.rel (%p216) target = $region32
        $region31: #{tpu_custom_call.1} parent=27 // pred_region
          %s219 = sand.u32 %s90, 1
          %s220 = scalar_lea.sflag [#allocation8], %s219
          %s221 = sand.u32 %s90, 1
          %s222 = smul.addr %s221, 512
          %s223 = scalar_lea.vmem [#allocation7], %s222
          %s224 = smul.u32 4, %s17
          %s226 = ssub.s32 8192, 8192
          %227 = vsyncadd %s220, %s226
          %s228 = smul.addr %s224, 16
          %s229 = smul.addr %s228, 128
          %s230 = scalar_lea.hbm %s3, %s229
          %s231 = sshll.u32 %s223, 4
          %s232 = int_to_ptr.vmem [resolvable:$true] %s231
          %237 = dma.hbm_to_vmem [thread:$0]  %s230, 8192, %s232, %s220, 256, 256, 16
        $region32: #{tpu_custom_call.1} parent=27 // pred_fallthru
          _
      $region28: #{tpu_custom_call.1} parent=5 // pred_fallthru
        _
      %p238 = scmp.le.s32.totalorder 1, %s17
      %p239 = scmp.lt.s32.totalorder %s17, 3
      %p240 = pnand %p238, %p239
      %p241 = pneg %p240
      // Predicated region
      $region33: #{tpu_custom_call.1} parent=5 // pred_check
        _
      $region34: #{tpu_custom_call.1} parent=5 // pred_check_branch
        %243 = sbr.rel (%p240) target = $region36
      $region35: #{tpu_custom_call.1} parent=5 // pred_region
        %s244 = ssub.s32 %s17, 1
        // Predicated region
        $region37: #{tpu_custom_call.1} parent=35 // pred_check
          %p245 = pneg %p38
        $region38: #{tpu_custom_call.1} parent=35 // pred_check_branch
          %247 = sbr.rel (%p245) target = $region40
        $region39: #{tpu_custom_call.1} parent=35 // pred_region
          %248 = dma.done [#allocation3], 2048
        $region40: #{tpu_custom_call.1} parent=35 // pred_fallthru
          _
        // Predicated region
        $region41: #{tpu_custom_call.1} parent=35 // pred_check
          %p249 = pneg %p59
        $region42: #{tpu_custom_call.1} parent=35 // pred_check_branch
          %251 = sbr.rel (%p249) target = $region44
        $region43: #{tpu_custom_call.1} parent=35 // pred_region
          %252 = dma.done [#allocation5], 1024
        $region44: #{tpu_custom_call.1} parent=35 // pred_fallthru
          _
        // Predicated region
        $region45: #{tpu_custom_call.1} parent=35 // pred_check
          %p253 = pneg %p80
        $region46: #{tpu_custom_call.1} parent=35 // pred_check_branch
          %255 = sbr.rel (%p253) target = $region48
        $region47: #{tpu_custom_call.1} parent=35 // pred_region
          %256 = dma.done [#allocation5], 512
        $region48: #{tpu_custom_call.1} parent=35 // pred_fallthru
          _
        %s257 = sand.u32 %s93, 1
        %s258 = scalar_lea.sflag [#allocation8], %s257
        %s259 = sand.u32 %s93, 1
        %s260 = smul.addr %s259, 512
        %s261 = scalar_lea.vmem [#allocation7], %s260
        // Predicated region
        $region49: #{tpu_custom_call.1} parent=35 // pred_check
          %p262 = pneg %p106
        $region50: #{tpu_custom_call.1} parent=35 // pred_check_branch
          %264 = sbr.rel (%p262) target = $region52
        $region51: #{tpu_custom_call.1} parent=35 // pred_region
          %265 = dma.done %s258, 8192
        $region52: #{tpu_custom_call.1} parent=35 // pred_fallthru
          _
        %p266 = pneg %p38
        %p267 = pneg %p35
        %p268 = pneg %p59
        %p269 = pneg %p56
        %p270 = pneg %p80
        %p271 = pneg %p77
        %s272 = sand.u32 %s93, 1
        %s273 = scalar_lea.sflag [#allocation8], %s272
        %s274 = sand.u32 %s93, 1
        %s275 = smul.addr %s274, 512
        %s276 = scalar_lea.vmem [#allocation7], %s275
        %p277 = pneg %p106
        %p278 = pneg %p103
        %p279 = pneg %p132
        %p280 = pneg %p129
        %s281 = smul.u32 4, %s22
        %p282 = scmp.lt.s32.totalorder %s281, 7
        %s283 = scalar_select %p282, %s281, 7
        %s284 = smul.addr %s283, 4
        %s285 = smul.addr %s284, 8
        %s286 = scalar_lea.vmem %s4, %s285
        %p287 = pneg %p158
        %p288 = pneg %p155
        %s289 = smul.u32 4, %s22
        %p290 = scmp.lt.s32.totalorder %s289, 7
        %s291 = scalar_select %p290, %s289, 7
        %s292 = smul.addr %s291, 8
        %s293 = smul.addr %s292, 8
        %s294 = scalar_lea.vmem %s5, %s293
        %s295 = smul.u32 4, %s22
        %s296 = smul.u32 4, %s22
        %p297 = scmp.lt.s32.totalorder %s296, 7
        %s298 = scalar_select %p297, %s296, 7
        %s299 = smul.addr %s298, 4
        %s300 = smul.addr %s299, 8
        %s301 = scalar_lea.vmem %s4, %s300
        %s302 = smul.u32 4, %s22
        %s303 = smul.u32 4, %s22
        %p304 = scmp.lt.s32.totalorder %s303, 7
        %s305 = scalar_select %p304, %s303, 7
        %s306 = smul.addr %s305, 8
        %s307 = smul.addr %s306, 8
        %s308 = scalar_lea.vmem %s5, %s307
        %s309 = smul.u32 4, %s22
        %v310 = vld [vmem:[#allocation2] sm:$0xff]
        %v311 = vld [vmem:[#allocation2 + $0x8] sm:$0xff]
        %v312 = vld [vmem:[#allocation2 + $0x10] sm:$0xff]
        %v313 = vld [vmem:[#allocation2 + $0x18] sm:$0xff]
        %v314 = vld [vmem:[#allocation2 + $0x20] sm:$0xff]
        %v315 = vld [vmem:[#allocation2 + $0x28] sm:$0xff]
        %v316 = vld [vmem:[#allocation2 + $0x30] sm:$0xff]
        %v317 = vld [vmem:[#allocation2 + $0x38] sm:$0xff]
        %v318 = vld [vmem:[#allocation2 + $0x40] sm:$0xff]
        %v319 = vld [vmem:[#allocation2 + $0x48] sm:$0xff]
        %v320 = vld [vmem:[#allocation2 + $0x50] sm:$0xff]
        %v321 = vld [vmem:[#allocation2 + $0x58] sm:$0xff]
        %v322 = vld [vmem:[#allocation2 + $0x60] sm:$0xff]
        %v323 = vld [vmem:[#allocation2 + $0x68] sm:$0xff]
        %v324 = vld [vmem:[#allocation2 + $0x70] sm:$0xff]
        %v325 = vld [vmem:[#allocation2 + $0x78] sm:$0xff]
        %v326 = vld [vmem:[#allocation4] sm:$0xff]
        %v327 = vld [vmem:[#allocation4 + $0x8] sm:$0xff]
        %v328 = vld [vmem:[#allocation4 + $0x10] sm:$0xff]
        %v329 = vld [vmem:[#allocation4 + $0x18] sm:$0xff]
        %v330 = vld [vmem:[#allocation4 + $0x20] sm:$0xff]
        %v331 = vld [vmem:[#allocation4 + $0x28] sm:$0xff]
        %v332 = vld [vmem:[#allocation4 + $0x30] sm:$0xff]
        %v333 = vld [vmem:[#allocation4 + $0x38] sm:$0xff]
        %v334 = vld [vmem:[#allocation6] sm:$0xff]
        %v335 = vld [vmem:[#allocation6 + $0x8] sm:$0xff]
        %v336 = vld [vmem:[#allocation6 + $0x10] sm:$0xff]
        %v337 = vld [vmem:[#allocation6 + $0x18] sm:$0x1]
        %v338 = vld [vmem:[%s261] sm:$0xff]
        %v339 = vld [vmem:[%s261 + $0x8] sm:$0xff]
        %v340 = vld [vmem:[%s261 + $0x10] sm:$0xff]
        %v341 = vld [vmem:[%s261 + $0x18] sm:$0xff]
        %v342 = vld [vmem:[%s261 + $0x20] sm:$0xff]
        %v343 = vld [vmem:[%s261 + $0x28] sm:$0xff]
        %v344 = vld [vmem:[%s261 + $0x30] sm:$0xff]
        %v345 = vld [vmem:[%s261 + $0x38] sm:$0xff]
        %v346 = vld [vmem:[%s261 + $0x40] sm:$0xff]
        %v347 = vld [vmem:[%s261 + $0x48] sm:$0xff]
        %v348 = vld [vmem:[%s261 + $0x50] sm:$0xff]
        %v349 = vld [vmem:[%s261 + $0x58] sm:$0xff]
        %v350 = vld [vmem:[%s261 + $0x60] sm:$0xff]
        %v351 = vld [vmem:[%s261 + $0x68] sm:$0xff]
        %v352 = vld [vmem:[%s261 + $0x70] sm:$0xff]
        %v353 = vld [vmem:[%s261 + $0x78] sm:$0xff]
        %vm354 = vcmask 523264
        %v356 = vsel %vm354, %v326, 0
        %v359 = vsel %vm354, %v327, 0
        %v362 = vsel %vm354, %v328, 0
        %v365 = vsel %vm354, %v329, 0
        %v368 = vsel %vm354, %v330, 0
        %v371 = vsel %vm354, %v331, 0
        %v374 = vsel %vm354, %v332, 0
        %v377 = vsel %vm354, %v333, 0
        %379 = vmatprep.subr.mxu0 %v339
        %380 = vmatpush1.msra.mxu0 %v338
        %381 = vmatprep.subr.mxu0 %v341
        %382 = vmatpush1.msra.mxu0 %v340
        %383 = vmatprep.subr.mxu0 %v343
        %384 = vmatpush1.msra.mxu0 %v342
        %385 = vmatprep.subr.mxu0 %v345
        %386 = vmatpush1.msra.mxu0 %v344
        %387 = vmatprep.subr.mxu0 %v347
        %388 = vmatpush1.msra.mxu0 %v346
        %389 = vmatprep.subr.mxu0 %v349
        %390 = vmatpush1.msra.mxu0 %v348
        %391 = vmatprep.subr.mxu0 %v351
        %392 = vmatpush1.msra.mxu0 %v350
        %393 = vmatprep.subr.mxu0 %v353
        %394 = vmatpush1.msra.mxu0 %v352
        %395 = vmatprep.subr.mxu0 0.0
        %396 = vmatpush1.msra.mxu0 0.0
        %397 = vmatprep.subr.mxu0 0.0
        %398 = vmatpush1.msra.mxu0 0.0
        %399 = vmatprep.subr.mxu0 0.0
        %400 = vmatpush1.msra.mxu0 0.0
        %401 = vmatprep.subr.mxu0 0.0
        %402 = vmatpush1.msra.mxu0 0.0
        %403 = vmatprep.subr.mxu0 0.0
        %404 = vmatpush1.msra.mxu0 0.0
        %405 = vmatprep.subr.mxu0 0.0
        %406 = vmatpush1.msra.mxu0 0.0
        %407 = vmatprep.subr.mxu0 0.0
        %408 = vmatpush1.msra.mxu0 0.0
        %409 = vmatprep.subr.mxu0 0.0
        %410 = vmatpush1.msra.mxu0 0.0
        %411 = vmatprep.subr.mxu0 0.0
        %412 = vmatpush1.msra.mxu0 0.0
        %413 = vmatprep.subr.mxu0 0.0
        %414 = vmatpush1.msra.mxu0 0.0
        %415 = vmatprep.subr.mxu0 0.0
        %416 = vmatpush1.msra.mxu0 0.0
        %417 = vmatprep.subr.mxu0 0.0
        %418 = vmatpush1.msra.mxu0 0.0
        %419 = vmatprep.subr.mxu0 0.0
        %420 = vmatpush1.msra.mxu0 0.0
        %421 = vmatprep.subr.mxu0 0.0
        %422 = vmatpush1.msra.mxu0 0.0
        %423 = vmatprep.subr.mxu0 0.0
        %424 = vmatpush1.msra.mxu0 0.0
        %425 = vmatprep.subr.mxu0 0.0
        %426 = vmatpush1.msra.mxu0 0.0
        %427 = vmatprep.subr.mxu0 0.0
        %428 = vmatpush1.msra.mxu0 0.0
        %429 = vmatprep.subr.mxu0 0.0
        %430 = vmatpush1.msra.mxu0 0.0
        %431 = vmatprep.subr.mxu0 0.0
        %432 = vmatpush1.msra.mxu0 0.0
        %433 = vmatprep.subr.mxu0 0.0
        %434 = vmatpush1.msra.mxu0 0.0
        %435 = vmatprep.subr.mxu0 0.0
        %436 = vmatpush1.msra.mxu0 0.0
        %437 = vmatprep.subr.mxu0 0.0
        %438 = vmatpush1.msra.mxu0 0.0
        %439 = vmatprep.subr.mxu0 0.0
        %440 = vmatpush1.msra.mxu0 0.0
        %441 = vmatprep.subr.mxu0 0.0
        %442 = vmatpush1.msra.mxu0 0.0
        %443 = vmatprep.mubr.f32.mxu0 0.0
        %444 = vmatmul.mubr.f32.gmra.mrb[0].mxu0 %v356
        %v445 = vpop.f32.mrb[0].mxu0
        %v446 = vadd.f32 0.0, %v445
        %v447 = vpop.f32.mrb[0].mxu0
        %v448 = vadd.f32 0.0, %v447
        %449 = vmatprep.mubr.f32.mxu0 0.0
        %450 = vmatmul.mubr.f32.gmra.mrb[0].mxu0 %v359
        %v451 = vpop.f32.mrb[0].mxu0
        %v452 = vadd.f32 0.0, %v451
        %v453 = vpop.f32.mrb[0].mxu0
        %v454 = vadd.f32 0.0, %v453
        %455 = vmatprep.mubr.f32.mxu0 0.0
        %456 = vmatmul.mubr.f32.gmra.mrb[0].mxu0 %v362
        %v457 = vpop.f32.mrb[0].mxu0
        %v458 = vadd.f32 0.0, %v457
        %v459 = vpop.f32.mrb[0].mxu0
        %v460 = vadd.f32 0.0, %v459
        %461 = vmatprep.mubr.f32.mxu0 0.0
        %462 = vmatmul.mubr.f32.gmra.mrb[0].mxu0 %v365
        %v463 = vpop.f32.mrb[0].mxu0
        %v464 = vadd.f32 0.0, %v463
        %v465 = vpop.f32.mrb[0].mxu0
        %v466 = vadd.f32 0.0, %v465
        %467 = vmatprep.mubr.f32.mxu0 0.0
        %468 = vmatmul.mubr.f32.gmra.mrb[0].mxu0 %v368
        %v469 = vpop.f32.mrb[0].mxu0
        %v470 = vadd.f32 0.0, %v469
        %v471 = vpop.f32.mrb[0].mxu0
        %v472 = vadd.f32 0.0, %v471
        %473 = vmatprep.mubr.f32.mxu0 0.0
        %474 = vmatmul.mubr.f32.gmra.mrb[0].mxu0 %v371
        %v475 = vpop.f32.mrb[0].mxu0
        %v476 = vadd.f32 0.0, %v475
        %v477 = vpop.f32.mrb[0].mxu0
        %v478 = vadd.f32 0.0, %v477
        %479 = vmatprep.mubr.f32.mxu0 0.0
        %480 = vmatmul.mubr.f32.gmra.mrb[0].mxu0 %v374
        %v481 = vpop.f32.mrb[0].mxu0
        %v482 = vadd.f32 0.0, %v481
        %v483 = vpop.f32.mrb[0].mxu0
        %v484 = vadd.f32 0.0, %v483
        %485 = vmatprep.mubr.f32.mxu0 0.0
        %486 = vmatmul.mubr.f32.gmra.mrb[0].mxu0 %v377
        %v487 = vpop.f32.mrb[0].mxu0
        %v488 = vadd.f32 0.0, %v487
        %v489 = vpop.f32.mrb[0].mxu0
        %v490 = vadd.f32 0.0, %v489
        %491 = vdwg.mxu0
        %v492 = vadd.f32 %v310, %v446
        %v493 = vadd.f32 %v311, %v448
        %v494 = vadd.f32 %v312, %v452
        %v495 = vadd.f32 %v313, %v454
        %v496 = vadd.f32 %v314, %v458
        %v497 = vadd.f32 %v315, %v460
        %v498 = vadd.f32 %v316, %v464
        %v499 = vadd.f32 %v317, %v466
        %v500 = vadd.f32 %v318, %v470
        %v501 = vadd.f32 %v319, %v472
        %v502 = vadd.f32 %v320, %v476
        %v503 = vadd.f32 %v321, %v478
        %v504 = vadd.f32 %v322, %v482
        %v505 = vadd.f32 %v323, %v484
        %v506 = vadd.f32 %v324, %v488
        %v507 = vadd.f32 %v325, %v490
        %v508 = vtanh.pop %v492
        %v509 = vtanh.pop %v493
        %v510 = vtanh.pop %v494
        %v511 = vtanh.pop %v495
        %v512 = vtanh.pop %v496
        %v513 = vtanh.pop %v497
        %v514 = vtanh.pop %v498
        %v515 = vtanh.pop %v499
        %v516 = vtanh.pop %v500
        %v517 = vtanh.pop %v501
        %v518 = vtanh.pop %v502
        %v519 = vtanh.pop %v503
        %v520 = vtanh.pop %v504
        %v521 = vtanh.pop %v505
        %v522 = vtanh.pop %v506
        %v523 = vtanh.pop %v507
        %v525 = vsel %vm354, %v334, 0
        %v528 = vsel %vm354, %v335, 0
        %v531 = vsel %vm354, %v336, 0
        %v534 = vsel %vm354, %v337, 0
        %536 = vmatprep.subr.mxu0 %v509
        %537 = vmatpush1.msra.mxu0 %v508
        %538 = vmatprep.subr.mxu0 %v511
        %539 = vmatpush1.msra.mxu0 %v510
        %540 = vmatprep.subr.mxu0 %v513
        %541 = vmatpush1.msra.mxu0 %v512
        %542 = vmatprep.subr.mxu0 %v515
        %543 = vmatpush1.msra.mxu0 %v514
        %544 = vmatprep.subr.mxu0 %v517
        %545 = vmatpush1.msra.mxu0 %v516
        %546 = vmatprep.subr.mxu0 %v519
        %547 = vmatpush1.msra.mxu0 %v518
        %548 = vmatprep.subr.mxu0 %v521
        %549 = vmatpush1.msra.mxu0 %v520
        %550 = vmatprep.subr.mxu0 %v523
        %551 = vmatpush1.msra.mxu0 %v522
        %552 = vmatprep.subr.mxu0 0.0
        %553 = vmatpush1.msra.mxu0 0.0
        %554 = vmatprep.subr.mxu0 0.0
        %555 = vmatpush1.msra.mxu0 0.0
        %556 = vmatprep.subr.mxu0 0.0
        %557 = vmatpush1.msra.mxu0 0.0
        %558 = vmatprep.subr.mxu0 0.0
        %559 = vmatpush1.msra.mxu0 0.0
        %560 = vmatprep.subr.mxu0 0.0
        %561 = vmatpush1.msra.mxu0 0.0
        %562 = vmatprep.subr.mxu0 0.0
        %563 = vmatpush1.msra.mxu0 0.0
        %564 = vmatprep.subr.mxu0 0.0
        %565 = vmatpush1.msra.mxu0 0.0
        %566 = vmatprep.subr.mxu0 0.0
        %567 = vmatpush1.msra.mxu0 0.0
        %568 = vmatprep.subr.mxu0 0.0
        %569 = vmatpush1.msra.mxu0 0.0
        %570 = vmatprep.subr.mxu0 0.0
        %571 = vmatpush1.msra.mxu0 0.0
        %572 = vmatprep.subr.mxu0 0.0
        %573 = vmatpush1.msra.mxu0 0.0
        %574 = vmatprep.subr.mxu0 0.0
        %575 = vmatpush1.msra.mxu0 0.0
        %576 = vmatprep.subr.mxu0 0.0
        %577 = vmatpush1.msra.mxu0 0.0
        %578 = vmatprep.subr.mxu0 0.0
        %579 = vmatpush1.msra.mxu0 0.0
        %580 = vmatprep.subr.mxu0 0.0
        %581 = vmatpush1.msra.mxu0 0.0
        %582 = vmatprep.subr.mxu0 0.0
        %583 = vmatpush1.msra.mxu0 0.0
        %584 = vmatprep.subr.mxu0 0.0
        %585 = vmatpush1.msra.mxu0 0.0
        %586 = vmatprep.subr.mxu0 0.0
        %587 = vmatpush1.msra.mxu0 0.0
        %588 = vmatprep.subr.mxu0 0.0
        %589 = vmatpush1.msra.mxu0 0.0
        %590 = vmatprep.subr.mxu0 0.0
        %591 = vmatpush1.msra.mxu0 0.0
        %592 = vmatprep.subr.mxu0 0.0
        %593 = vmatpush1.msra.mxu0 0.0
        %594 = vmatprep.subr.mxu0 0.0
        %595 = vmatpush1.msra.mxu0 0.0
        %596 = vmatprep.subr.mxu0 0.0
        %597 = vmatpush1.msra.mxu0 0.0
        %598 = vmatprep.subr.mxu0 0.0
        %599 = vmatpush1.msra.mxu0 0.0
        %600 = vmatprep.mubr.f32.mxu0 0.0
        %601 = vmatmul.mubr.f32.gmra.mrb[0].mxu0 %v525
        %v602 = vpop.f32.mrb[0].mxu0
        %v603 = vadd.f32 0.0, %v602
        %v604 = vpop.f32.mrb[0].mxu0
        %v605 = vadd.f32 0.0, %v604
        %606 = vmatprep.mubr.f32.mxu0 0.0
        %607 = vmatmul.mubr.f32.gmra.mrb[0].mxu0 %v528
        %v608 = vpop.f32.mrb[0].mxu0
        %v609 = vadd.f32 0.0, %v608
        %v610 = vpop.f32.mrb[0].mxu0
        %v611 = vadd.f32 0.0, %v610
        %612 = vmatprep.mubr.f32.mxu0 0.0
        %613 = vmatmul.mubr.f32.gmra.mrb[0].mxu0 %v531
        %v614 = vpop.f32.mrb[0].mxu0
        %v615 = vadd.f32 0.0, %v614
        %v616 = vpop.f32.mrb[0].mxu0
        %v617 = vadd.f32 0.0, %v616
        %618 = vmatprep.mubr.f32.mxu0 0.0
        %619 = vmatmul.mubr.f32.gmra.mrb[0].mxu0 %v534
        %v620 = vpop.f32.mrb[0].mxu0
        %v621 = vadd.f32 0.0, %v620
        %v622 = vpop.f32.mrb[0].mxu0
        %v623 = vadd.f32 0.0, %v622
        %624 = vdwg.mxu0
        %v625 = vmax.f32 %v603, %v605
        %626 = vmax.xlane.f32.xlu0 %v625
        %v627 = vpop.xlane.xlu0 %626
        %v628 = vmax.f32 %v609, %v611
        %629 = vmax.xlane.f32.xlu0 %v628
        %v630 = vpop.xlane.xlu0 %629
        %v631 = vmax.f32 %v615, %v617
        %632 = vmax.xlane.f32.xlu0 %v631
        %v633 = vpop.xlane.xlu0 %632
        %vm634 = vcmask 1040384
        %v635 = vsel %vm634, %v621, -inf
        %v636 = vsel %vm634, %v623, -inf
        %v637 = vmax.f32 %v635, %v636
        %638 = vmax.xlane.f32.xlu0 %v637
        %v639 = vpop.xlane.xlu0 %638
        %v640 = vsub.f32 %v603, %v627
        %v641 = vsub.f32 %v605, %v627
        %v642 = vsub.f32 %v609, %v630
        %v643 = vsub.f32 %v611, %v630
        %v644 = vsub.f32 %v615, %v633
        %v645 = vsub.f32 %v617, %v633
        %v646 = vsub.f32 %v621, %v639
        %v647 = vsub.f32 %v623, %v639
        %v648 = vmul.f32 %v640, 1.442695
        %v649 = vpow.pop %v648
        %v650 = vmul.f32 %v641, 1.442695
        %v651 = vpow.pop %v650
        %v652 = vmul.f32 %v642, 1.442695
        %v653 = vpow.pop %v652
        %v654 = vmul.f32 %v643, 1.442695
        %v655 = vpow.pop %v654
        %v656 = vmul.f32 %v644, 1.442695
        %v657 = vpow.pop %v656
        %v658 = vmul.f32 %v645, 1.442695
        %v659 = vpow.pop %v658
        %v660 = vmul.f32 %v646, 1.442695
        %v661 = vpow.pop %v660
        %v662 = vmul.f32 %v647, 1.442695
        %v663 = vpow.pop %v662
        %v664 = vadd.f32 %v649, %v651
        %665 = vadd.xlane.f32.xlu0 %v664
        %v666 = vpop.xlane.xlu0 %665
        %v667 = vadd.f32 %v653, %v655
        %668 = vadd.xlane.f32.xlu0 %v667
        %v669 = vpop.xlane.xlu0 %668
        %v670 = vadd.f32 %v657, %v659
        %671 = vadd.xlane.f32.xlu0 %v670
        %v672 = vpop.xlane.xlu0 %671
        %v673 = vsel %vm634, %v661, 0.0
        %v674 = vsel %vm634, %v663, 0.0
        %v675 = vadd.f32 %v673, %v674
        %676 = vadd.xlane.f32.xlu0 %v675
        %v677 = vpop.xlane.xlu0 %676
        %v678 = vrcp.pop %v666
        %v679 = vrcp.pop %v669
        %v680 = vrcp.pop %v672
        %v681 = vrcp.pop %v677
        %v682 = vmul.f32 %v649, %v678
        %v683 = vmul.f32 %v651, %v678
        %v684 = vmul.f32 %v653, %v679
        %v685 = vmul.f32 %v655, %v679
        %v686 = vmul.f32 %v657, %v680
        %v687 = vmul.f32 %v659, %v680
        %v688 = vmul.f32 %v661, %v681
        %v689 = vmul.f32 %v663, %v681
        %690 = vmatprep.subr.mxu0 %v339
        %691 = vmatpush1.xpose.msra.mxu0 %v338
        %692 = vmatprep.subr.mxu0 %v341
        %693 = vmatpush1.xpose.msra.mxu0 %v340
        %694 = vmatprep.subr.mxu0 %v343
        %695 = vmatpush1.xpose.msra.mxu0 %v342
        %696 = vmatprep.subr.mxu0 %v345
        %697 = vmatpush1.xpose.msra.mxu0 %v344
        %698 = vmatprep.subr.mxu0 %v347
        %699 = vmatpush1.xpose.msra.mxu0 %v346
        %700 = vmatprep.subr.mxu0 %v349
        %701 = vmatpush1.xpose.msra.mxu0 %v348
        %702 = vmatprep.subr.mxu0 %v351
        %703 = vmatpush1.xpose.msra.mxu0 %v350
        %704 = vmatprep.subr.mxu0 %v353
        %705 = vmatpush1.xpose.msra.mxu0 %v352
        %706 = vmatprep.subr.mxu0 0.0
        %707 = vmatpush1.xpose.msra.mxu0 0.0
        %708 = vmatprep.subr.mxu0 0.0
        %709 = vmatpush1.xpose.msra.mxu0 0.0
        %710 = vmatprep.subr.mxu0 0.0
        %711 = vmatpush1.xpose.msra.mxu0 0.0
        %712 = vmatprep.subr.mxu0 0.0
        %713 = vmatpush1.xpose.msra.mxu0 0.0
        %714 = vmatprep.subr.mxu0 0.0
        %715 = vmatpush1.xpose.msra.mxu0 0.0
        %716 = vmatprep.subr.mxu0 0.0
        %717 = vmatpush1.xpose.msra.mxu0 0.0
        %718 = vmatprep.subr.mxu0 0.0
        %719 = vmatpush1.xpose.msra.mxu0 0.0
        %720 = vmatprep.subr.mxu0 0.0
        %721 = vmatpush1.xpose.msra.mxu0 0.0
        %722 = vmatprep.subr.mxu0 0.0
        %723 = vmatpush1.xpose.msra.mxu0 0.0
        %724 = vmatprep.subr.mxu0 0.0
        %725 = vmatpush1.xpose.msra.mxu0 0.0
        %726 = vmatprep.subr.mxu0 0.0
        %727 = vmatpush1.xpose.msra.mxu0 0.0
        %728 = vmatprep.subr.mxu0 0.0
        %729 = vmatpush1.xpose.msra.mxu0 0.0
        %730 = vmatprep.subr.mxu0 0.0
        %731 = vmatpush1.xpose.msra.mxu0 0.0
        %732 = vmatprep.subr.mxu0 0.0
        %733 = vmatpush1.xpose.msra.mxu0 0.0
        %734 = vmatprep.subr.mxu0 0.0
        %735 = vmatpush1.xpose.msra.mxu0 0.0
        %736 = vmatprep.subr.mxu0 0.0
        %737 = vmatpush1.xpose.msra.mxu0 0.0
        %738 = vmatprep.subr.mxu0 0.0
        %739 = vmatpush1.xpose.msra.mxu0 0.0
        %740 = vmatprep.subr.mxu0 0.0
        %741 = vmatpush1.xpose.msra.mxu0 0.0
        %742 = vmatprep.subr.mxu0 0.0
        %743 = vmatpush1.xpose.msra.mxu0 0.0
        %744 = vmatprep.subr.mxu0 0.0
        %745 = vmatpush1.xpose.msra.mxu0 0.0
        %746 = vmatprep.subr.mxu0 0.0
        %747 = vmatpush1.xpose.msra.mxu0 0.0
        %748 = vmatprep.subr.mxu0 0.0
        %749 = vmatpush1.xpose.msra.mxu0 0.0
        %750 = vmatprep.subr.mxu0 0.0
        %751 = vmatpush1.xpose.msra.mxu0 0.0
        %752 = vmatprep.subr.mxu0 0.0
        %753 = vmatpush1.xpose.msra.mxu0 0.0
        %754 = vmatprep.mubr.f32.mxu0 %v683
        %755 = vmatmul.mubr.f32.gmra.mrb[0].mxu0 %v682
        %v756 = vpop.f32.mrb[0].mxu0
        %v757 = vadd.f32 0.0, %v756
        %v758 = vpop.f32.mrb[0].mxu0
        %759 = vmatprep.mubr.f32.mxu0 %v685
        %760 = vmatmul.mubr.f32.gmra.mrb[0].mxu0 %v684
        %v761 = vpop.f32.mrb[0].mxu0
        %v762 = vadd.f32 0.0, %v761
        %v763 = vpop.f32.mrb[0].mxu0
        %764 = vmatprep.mubr.f32.mxu0 %v687
        %765 = vmatmul.mubr.f32.gmra.mrb[0].mxu0 %v686
        %v766 = vpop.f32.mrb[0].mxu0
        %v767 = vadd.f32 0.0, %v766
        %v768 = vpop.f32.mrb[0].mxu0
        %769 = vmatprep.mubr.f32.mxu0 %v689
        %770 = vmatmul.mubr.f32.gmra.mrb[0].mxu0 %v688
        %v771 = vpop.f32.mrb[0].mxu0
        %v772 = vadd.f32 0.0, %v771
        %v773 = vpop.f32.mrb[0].mxu0
        %774 = vdwg.mxu0
        %775 = vst.msk [vmem:[%s301] sm:$0xff] %vm354, %v757
        %776 = vst.msk [vmem:[%s301 + $0x8] sm:$0xff] %vm354, %v762
        %777 = vst.msk [vmem:[%s301 + $0x10] sm:$0xff] %vm354, %v767
        %vm778 = vcmask 516096
        %779 = vst.msk [vmem:[%s301 + $0x18] sm:$0x1] %vm778, %v772
        %780 = vst [vmem:[%s308] sm:$0xff] %v682
        %781 = vst [vmem:[%s308 + $0x8] sm:$0xff] %v683
        %782 = vst [vmem:[%s308 + $0x10] sm:$0xff] %v684
        %783 = vst [vmem:[%s308 + $0x18] sm:$0xff] %v685
        %784 = vst [vmem:[%s308 + $0x20] sm:$0xff] %v686
        %785 = vst [vmem:[%s308 + $0x28] sm:$0xff] %v687
        %786 = vst [vmem:[%s308 + $0x30] sm:$0x1] %v688
        %787 = vst [vmem:[%s308 + $0x38] sm:$0x1] %v689
        %s788 = scalar_lea.vmem %s261, 128 [#allocation7]
        %v789 = vld [vmem:[%s788] sm:$0xff]
        %v790 = vld [vmem:[%s788 + $0x8] sm:$0xff]
        %v791 = vld [vmem:[%s788 + $0x10] sm:$0xff]
        %v792 = vld [vmem:[%s788 + $0x18] sm:$0xff]
        %v793 = vld [vmem:[%s788 + $0x20] sm:$0xff]
        %v794 = vld [vmem:[%s788 + $0x28] sm:$0xff]
        %v795 = vld [vmem:[%s788 + $0x30] sm:$0xff]
        %v796 = vld [vmem:[%s788 + $0x38] sm:$0xff]
        %v797 = vld [vmem:[%s788 + $0x40] sm:$0xff]
        %v798 = vld [vmem:[%s788 + $0x48] sm:$0xff]
        %v799 = vld [vmem:[%s788 + $0x50] sm:$0xff]
        %v800 = vld [vmem:[%s788 + $0x58] sm:$0xff]
        %v801 = vld [vmem:[%s788 + $0x60] sm:$0xff]
        %v802 = vld [vmem:[%s788 + $0x68] sm:$0xff]
        %v803 = vld [vmem:[%s788 + $0x70] sm:$0xff]
        %v804 = vld [vmem:[%s788 + $0x78] sm:$0xff]
        %805 = vmatprep.subr.mxu0 %v790
        %806 = vmatpush1.msra.mxu0 %v789
        %807 = vmatprep.subr.mxu0 %v792
        %808 = vmatpush1.msra.mxu0 %v791
        %809 = vmatprep.subr.mxu0 %v794
        %810 = vmatpush1.msra.mxu0 %v793
        %811 = vmatprep.subr.mxu0 %v796
        %812 = vmatpush1.msra.mxu0 %v795
        %813 = vmatprep.subr.mxu0 %v798
        %814 = vmatpush1.msra.mxu0 %v797
        %815 = vmatprep.subr.mxu0 %v800
        %816 = vmatpush1.msra.mxu0 %v799
        %817 = vmatprep.subr.mxu0 %v802
        %818 = vmatpush1.msra.mxu0 %v801
        %819 = vmatprep.subr.mxu0 %v804
        %820 = vmatpush1.msra.mxu0 %v803
        %821 = vmatprep.subr.mxu0 0.0
        %822 = vmatpush1.msra.mxu0 0.0
        %823 = vmatprep.subr.mxu0 0.0
        %824 = vmatpush1.msra.mxu0 0.0
        %825 = vmatprep.subr.mxu0 0.0
        %826 = vmatpush1.msra.mxu0 0.0
        %827 = vmatprep.subr.mxu0 0.0
        %828 = vmatpush1.msra.mxu0 0.0
        %829 = vmatprep.subr.mxu0 0.0
        %830 = vmatpush1.msra.mxu0 0.0
        %831 = vmatprep.subr.mxu0 0.0
        %832 = vmatpush1.msra.mxu0 0.0
        %833 = vmatprep.subr.mxu0 0.0
        %834 = vmatpush1.msra.mxu0 0.0
        %835 = vmatprep.subr.mxu0 0.0
        %836 = vmatpush1.msra.mxu0 0.0
        %837 = vmatprep.subr.mxu0 0.0
        %838 = vmatpush1.msra.mxu0 0.0
        %839 = vmatprep.subr.mxu0 0.0
        %840 = vmatpush1.msra.mxu0 0.0
        %841 = vmatprep.subr.mxu0 0.0
        %842 = vmatpush1.msra.mxu0 0.0
        %843 = vmatprep.subr.mxu0 0.0
        %844 = vmatpush1.msra.mxu0 0.0
        %845 = vmatprep.subr.mxu0 0.0
        %846 = vmatpush1.msra.mxu0 0.0
        %847 = vmatprep.subr.mxu0 0.0
        %848 = vmatpush1.msra.mxu0 0.0
        %849 = vmatprep.subr.mxu0 0.0
        %850 = vmatpush1.msra.mxu0 0.0
        %851 = vmatprep.subr.mxu0 0.0
        %852 = vmatpush1.msra.mxu0 0.0
        %853 = vmatprep.subr.mxu0 0.0
        %854 = vmatpush1.msra.mxu0 0.0
        %855 = vmatprep.subr.mxu0 0.0
        %856 = vmatpush1.msra.mxu0 0.0
        %857 = vmatprep.subr.mxu0 0.0
        %858 = vmatpush1.msra.mxu0 0.0
        %859 = vmatprep.subr.mxu0 0.0
        %860 = vmatpush1.msra.mxu0 0.0
        %861 = vmatprep.subr.mxu0 0.0
        %862 = vmatpush1.msra.mxu0 0.0
        %863 = vmatprep.subr.mxu0 0.0
        %864 = vmatpush1.msra.mxu0 0.0
        %865 = vmatprep.subr.mxu0 0.0
        %866 = vmatpush1.msra.mxu0 0.0
        %867 = vmatprep.subr.mxu0 0.0
        %868 = vmatpush1.msra.mxu0 0.0
        %869 = vmatprep.mubr.f32.mxu0 0.0
        %870 = vmatmul.mubr.f32.gmra.mrb[0].mxu0 %v356
        %v871 = vpop.f32.mrb[0].mxu0
        %v872 = vadd.f32 0.0, %v871
        %v873 = vpop.f32.mrb[0].mxu0
        %v874 = vadd.f32 0.0, %v873
        %875 = vmatprep.mubr.f32.mxu0 0.0
        %876 = vmatmul.mubr.f32.gmra.mrb[0].mxu0 %v359
        %v877 = vpop.f32.mrb[0].mxu0
        %v878 = vadd.f32 0.0, %v877
        %v879 = vpop.f32.mrb[0].mxu0
        %v880 = vadd.f32 0.0, %v879
        %881 = vmatprep.mubr.f32.mxu0 0.0
        %882 = vmatmul.mubr.f32.gmra.mrb[0].mxu0 %v362
        %v883 = vpop.f32.mrb[0].mxu0
        %v884 = vadd.f32 0.0, %v883
        %v885 = vpop.f32.mrb[0].mxu0
        %v886 = vadd.f32 0.0, %v885
        %887 = vmatprep.mubr.f32.mxu0 0.0
        %888 = vmatmul.mubr.f32.gmra.mrb[0].mxu0 %v365
        %v889 = vpop.f32.mrb[0].mxu0
        %v890 = vadd.f32 0.0, %v889
        %v891 = vpop.f32.mrb[0].mxu0
        %v892 = vadd.f32 0.0, %v891
        %893 = vmatprep.mubr.f32.mxu0 0.0
        %894 = vmatmul.mubr.f32.gmra.mrb[0].mxu0 %v368
        %v895 = vpop.f32.mrb[0].mxu0
        %v896 = vadd.f32 0.0, %v895
        %v897 = vpop.f32.mrb[0].mxu0
        %v898 = vadd.f32 0.0, %v897
        %899 = vmatprep.mubr.f32.mxu0 0.0
        %900 = vmatmul.mubr.f32.gmra.mrb[0].mxu0 %v371
        %v901 = vpop.f32.mrb[0].mxu0
        %v902 = vadd.f32 0.0, %v901
        %v903 = vpop.f32.mrb[0].mxu0
        %v904 = vadd.f32 0.0, %v903
        %905 = vmatprep.mubr.f32.mxu0 0.0
        %906 = vmatmul.mubr.f32.gmra.mrb[0].mxu0 %v374
        %v907 = vpop.f32.mrb[0].mxu0
        %v908 = vadd.f32 0.0, %v907
        %v909 = vpop.f32.mrb[0].mxu0
        %v910 = vadd.f32 0.0, %v909
        %911 = vmatprep.mubr.f32.mxu0 0.0
        %912 = vmatmul.mubr.f32.gmra.mrb[0].mxu0 %v377
        %v913 = vpop.f32.mrb[0].mxu0
        %v914 = vadd.f32 0.0, %v913
        %v915 = vpop.f32.mrb[0].mxu0
        %v916 = vadd.f32 0.0, %v915
        %917 = vdwg.mxu0
        %v918 = vadd.f32 %v310, %v872
        %v919 = vadd.f32 %v311, %v874
        %v920 = vadd.f32 %v312, %v878
        %v921 = vadd.f32 %v313, %v880
        %v922 = vadd.f32 %v314, %v884
        %v923 = vadd.f32 %v315, %v886
        %v924 = vadd.f32 %v316, %v890
        %v925 = vadd.f32 %v317, %v892
        %v926 = vadd.f32 %v318, %v896
        %v927 = vadd.f32 %v319, %v898
        %v928 = vadd.f32 %v320, %v902
        %v929 = vadd.f32 %v321, %v904
        %v930 = vadd.f32 %v322, %v908
        %v931 = vadd.f32 %v323, %v910
        %v932 = vadd.f32 %v324, %v914
        %v933 = vadd.f32 %v325, %v916
        %v934 = vtanh.pop %v918
        %v935 = vtanh.pop %v919
        %v936 = vtanh.pop %v920
        %v937 = vtanh.pop %v921
        %v938 = vtanh.pop %v922
        %v939 = vtanh.pop %v923
        %v940 = vtanh.pop %v924
        %v941 = vtanh.pop %v925
        %v942 = vtanh.pop %v926
        %v943 = vtanh.pop %v927
        %v944 = vtanh.pop %v928
        %v945 = vtanh.pop %v929
        %v946 = vtanh.pop %v930
        %v947 = vtanh.pop %v931
        %v948 = vtanh.pop %v932
        %v949 = vtanh.pop %v933
        %950 = vmatprep.subr.mxu0 %v935
        %951 = vmatpush1.msra.mxu0 %v934
        %952 = vmatprep.subr.mxu0 %v937
        %953 = vmatpush1.msra.mxu0 %v936
        %954 = vmatprep.subr.mxu0 %v939
        %955 = vmatpush1.msra.mxu0 %v938
        %956 = vmatprep.subr.mxu0 %v941
        %957 = vmatpush1.msra.mxu0 %v940
        %958 = vmatprep.subr.mxu0 %v943
        %959 = vmatpush1.msra.mxu0 %v942
        %960 = vmatprep.subr.mxu0 %v945
        %961 = vmatpush1.msra.mxu0 %v944
        %962 = vmatprep.subr.mxu0 %v947
        %963 = vmatpush1.msra.mxu0 %v946
        %964 = vmatprep.subr.mxu0 %v949
        %965 = vmatpush1.msra.mxu0 %v948
        %966 = vmatprep.subr.mxu0 0.0
        %967 = vmatpush1.msra.mxu0 0.0
        %968 = vmatprep.subr.mxu0 0.0
        %969 = vmatpush1.msra.mxu0 0.0
        %970 = vmatprep.subr.mxu0 0.0
        %971 = vmatpush1.msra.mxu0 0.0
        %972 = vmatprep.subr.mxu0 0.0
        %973 = vmatpush1.msra.mxu0 0.0
        %974 = vmatprep.subr.mxu0 0.0
        %975 = vmatpush1.msra.mxu0 0.0
        %976 = vmatprep.subr.mxu0 0.0
        %977 = vmatpush1.msra.mxu0 0.0
        %978 = vmatprep.subr.mxu0 0.0
        %979 = vmatpush1.msra.mxu0 0.0
        %980 = vmatprep.subr.mxu0 0.0
        %981 = vmatpush1.msra.mxu0 0.0
        %982 = vmatprep.subr.mxu0 0.0
        %983 = vmatpush1.msra.mxu0 0.0
        %984 = vmatprep.subr.mxu0 0.0
        %985 = vmatpush1.msra.mxu0 0.0
        %986 = vmatprep.subr.mxu0 0.0
        %987 = vmatpush1.msra.mxu0 0.0
        %988 = vmatprep.subr.mxu0 0.0
        %989 = vmatpush1.msra.mxu0 0.0
        %990 = vmatprep.subr.mxu0 0.0
        %991 = vmatpush1.msra.mxu0 0.0
        %992 = vmatprep.subr.mxu0 0.0
        %993 = vmatpush1.msra.mxu0 0.0
        %994 = vmatprep.subr.mxu0 0.0
        %995 = vmatpush1.msra.mxu0 0.0
        %996 = vmatprep.subr.mxu0 0.0
        %997 = vmatpush1.msra.mxu0 0.0
        %998 = vmatprep.subr.mxu0 0.0
        %999 = vmatpush1.msra.mxu0 0.0
        %1000 = vmatprep.subr.mxu0 0.0
        %1001 = vmatpush1.msra.mxu0 0.0
        %1002 = vmatprep.subr.mxu0 0.0
        %1003 = vmatpush1.msra.mxu0 0.0
        %1004 = vmatprep.subr.mxu0 0.0
        %1005 = vmatpush1.msra.mxu0 0.0
        %1006 = vmatprep.subr.mxu0 0.0
        %1007 = vmatpush1.msra.mxu0 0.0
        %1008 = vmatprep.subr.mxu0 0.0
        %1009 = vmatpush1.msra.mxu0 0.0
        %1010 = vmatprep.subr.mxu0 0.0
        %1011 = vmatpush1.msra.mxu0 0.0
        %1012 = vmatprep.subr.mxu0 0.0
        %1013 = vmatpush1.msra.mxu0 0.0
        %1014 = vmatprep.mubr.f32.mxu0 0.0
        %1015 = vmatmul.mubr.f32.gmra.mrb[0].mxu0 %v525
        %v1016 = vpop.f32.mrb[0].mxu0
        %v1017 = vadd.f32 0.0, %v1016
        %v1018 = vpop.f32.mrb[0].mxu0
        %v1019 = vadd.f32 0.0, %v1018
        %1020 = vmatprep.mubr.f32.mxu0 0.0
        %1021 = vmatmul.mubr.f32.gmra.mrb[0].mxu0 %v528
        %v1022 = vpop.f32.mrb[0].mxu0
        %v1023 = vadd.f32 0.0, %v1022
        %v1024 = vpop.f32.mrb[0].mxu0
        %v1025 = vadd.f32 0.0, %v1024
        %1026 = vmatprep.mubr.f32.mxu0 0.0
        %1027 = vmatmul.mubr.f32.gmra.mrb[0].mxu0 %v531
        %v1028 = vpop.f32.mrb[0].mxu0
        %v1029 = vadd.f32 0.0, %v1028
        %v1030 = vpop.f32.mrb[0].mxu0
        %v1031 = vadd.f32 0.0, %v1030
        %1032 = vmatprep.mubr.f32.mxu0 0.0
        %1033 = vmatmul.mubr.f32.gmra.mrb[0].mxu0 %v534
        %v1034 = vpop.f32.mrb[0].mxu0
        %v1035 = vadd.f32 0.0, %v1034
        %v1036 = vpop.f32.mrb[0].mxu0
        %v1037 = vadd.f32 0.0, %v1036
        %1038 = vdwg.mxu0
        %v1039 = vmax.f32 %v1017, %v1019
        %1040 = vmax.xlane.f32.xlu0 %v1039
        %v1041 = vpop.xlane.xlu0 %1040
        %v1042 = vmax.f32 %v1023, %v1025
        %1043 = vmax.xlane.f32.xlu0 %v1042
        %v1044 = vpop.xlane.xlu0 %1043
        %v1045 = vmax.f32 %v1029, %v1031
        %1046 = vmax.xlane.f32.xlu0 %v1045
        %v1047 = vpop.xlane.xlu0 %1046
        %v1048 = vsel %vm634, %v1035, -inf
        %v1049 = vsel %vm634, %v1037, -inf
        %v1050 = vmax.f32 %v1048, %v1049
        %1051 = vmax.xlane.f32.xlu0 %v1050
        %v1052 = vpop.xlane.xlu0 %1051
        %v1053 = vsub.f32 %v1017, %v1041
        %v1054 = vsub.f32 %v1019, %v1041
        %v1055 = vsub.f32 %v1023, %v1044
        %v1056 = vsub.f32 %v1025, %v1044
        %v1057 = vsub.f32 %v1029, %v1047
        %v1058 = vsub.f32 %v1031, %v1047
        %v1059 = vsub.f32 %v1035, %v1052
        %v1060 = vsub.f32 %v1037, %v1052
        %v1061 = vmul.f32 %v1053, 1.442695
        %v1062 = vpow.pop %v1061
        %v1063 = vmul.f32 %v1054, 1.442695
        %v1064 = vpow.pop %v1063
        %v1065 = vmul.f32 %v1055, 1.442695
        %v1066 = vpow.pop %v1065
        %v1067 = vmul.f32 %v1056, 1.442695
        %v1068 = vpow.pop %v1067
        %v1069 = vmul.f32 %v1057, 1.442695
        %v1070 = vpow.pop %v1069
        %v1071 = vmul.f32 %v1058, 1.442695
        %v1072 = vpow.pop %v1071
        %v1073 = vmul.f32 %v1059, 1.442695
        %v1074 = vpow.pop %v1073
        %v1075 = vmul.f32 %v1060, 1.442695
        %v1076 = vpow.pop %v1075
        %v1077 = vadd.f32 %v1062, %v1064
        %1078 = vadd.xlane.f32.xlu0 %v1077
        %v1079 = vpop.xlane.xlu0 %1078
        %v1080 = vadd.f32 %v1066, %v1068
        %1081 = vadd.xlane.f32.xlu0 %v1080
        %v1082 = vpop.xlane.xlu0 %1081
        %v1083 = vadd.f32 %v1070, %v1072
        %1084 = vadd.xlane.f32.xlu0 %v1083
        %v1085 = vpop.xlane.xlu0 %1084
        %v1086 = vsel %vm634, %v1074, 0.0
        %v1087 = vsel %vm634, %v1076, 0.0
        %v1088 = vadd.f32 %v1086, %v1087
        %1089 = vadd.xlane.f32.xlu0 %v1088
        %v1090 = vpop.xlane.xlu0 %1089
        %v1091 = vrcp.pop %v1079
        %v1092 = vrcp.pop %v1082
        %v1093 = vrcp.pop %v1085
        %v1094 = vrcp.pop %v1090
        %v1095 = vmul.f32 %v1062, %v1091
        %v1096 = vmul.f32 %v1064, %v1091
        %v1097 = vmul.f32 %v1066, %v1092
        %v1098 = vmul.f32 %v1068, %v1092
        %v1099 = vmul.f32 %v1070, %v1093
        %v1100 = vmul.f32 %v1072, %v1093
        %v1101 = vmul.f32 %v1074, %v1094
        %v1102 = vmul.f32 %v1076, %v1094
        %1103 = vmatprep.subr.mxu0 %v790
        %1104 = vmatpush1.xpose.msra.mxu0 %v789
        %1105 = vmatprep.subr.mxu0 %v792
        %1106 = vmatpush1.xpose.msra.mxu0 %v791
        %1107 = vmatprep.subr.mxu0 %v794
        %1108 = vmatpush1.xpose.msra.mxu0 %v793
        %1109 = vmatprep.subr.mxu0 %v796
        %1110 = vmatpush1.xpose.msra.mxu0 %v795
        %1111 = vmatprep.subr.mxu0 %v798
        %1112 = vmatpush1.xpose.msra.mxu0 %v797
        %1113 = vmatprep.subr.mxu0 %v800
        %1114 = vmatpush1.xpose.msra.mxu0 %v799
        %1115 = vmatprep.subr.mxu0 %v802
        %1116 = vmatpush1.xpose.msra.mxu0 %v801
        %1117 = vmatprep.subr.mxu0 %v804
        %1118 = vmatpush1.xpose.msra.mxu0 %v803
        %1119 = vmatprep.subr.mxu0 0.0
        %1120 = vmatpush1.xpose.msra.mxu0 0.0
        %1121 = vmatprep.subr.mxu0 0.0
        %1122 = vmatpush1.xpose.msra.mxu0 0.0
        %1123 = vmatprep.subr.mxu0 0.0
        %1124 = vmatpush1.xpose.msra.mxu0 0.0
        %1125 = vmatprep.subr.mxu0 0.0
        %1126 = vmatpush1.xpose.msra.mxu0 0.0
        %1127 = vmatprep.subr.mxu0 0.0
        %1128 = vmatpush1.xpose.msra.mxu0 0.0
        %1129 = vmatprep.subr.mxu0 0.0
        %1130 = vmatpush1.xpose.msra.mxu0 0.0
        %1131 = vmatprep.subr.mxu0 0.0
        %1132 = vmatpush1.xpose.msra.mxu0 0.0
        %1133 = vmatprep.subr.mxu0 0.0
        %1134 = vmatpush1.xpose.msra.mxu0 0.0
        %1135 = vmatprep.subr.mxu0 0.0
        %1136 = vmatpush1.xpose.msra.mxu0 0.0
        %1137 = vmatprep.subr.mxu0 0.0
        %1138 = vmatpush1.xpose.msra.mxu0 0.0
        %1139 = vmatprep.subr.mxu0 0.0
        %1140 = vmatpush1.xpose.msra.mxu0 0.0
        %1141 = vmatprep.subr.mxu0 0.0
        %1142 = vmatpush1.xpose.msra.mxu0 0.0
        %1143 = vmatprep.subr.mxu0 0.0
        %1144 = vmatpush1.xpose.msra.mxu0 0.0
        %1145 = vmatprep.subr.mxu0 0.0
        %1146 = vmatpush1.xpose.msra.mxu0 0.0
        %1147 = vmatprep.subr.mxu0 0.0
        %1148 = vmatpush1.xpose.msra.mxu0 0.0
        %1149 = vmatprep.subr.mxu0 0.0
        %1150 = vmatpush1.xpose.msra.mxu0 0.0
        %1151 = vmatprep.subr.mxu0 0.0
        %1152 = vmatpush1.xpose.msra.mxu0 0.0
        %1153 = vmatprep.subr.mxu0 0.0
        %1154 = vmatpush1.xpose.msra.mxu0 0.0
        %1155 = vmatprep.subr.mxu0 0.0
        %1156 = vmatpush1.xpose.msra.mxu0 0.0
        %1157 = vmatprep.subr.mxu0 0.0
        %1158 = vmatpush1.xpose.msra.mxu0 0.0
        %1159 = vmatprep.subr.mxu0 0.0
        %1160 = vmatpush1.xpose.msra.mxu0 0.0
        %1161 = vmatprep.subr.mxu0 0.0
        %1162 = vmatpush1.xpose.msra.mxu0 0.0
        %1163 = vmatprep.subr.mxu0 0.0
        %1164 = vmatpush1.xpose.msra.mxu0 0.0
        %1165 = vmatprep.subr.mxu0 0.0
        %1166 = vmatpush1.xpose.msra.mxu0 0.0
        %1167 = vmatprep.mubr.f32.mxu0 %v1096
        %1168 = vmatmul.mubr.f32.gmra.mrb[0].mxu0 %v1095
        %v1169 = vpop.f32.mrb[0].mxu0
        %v1170 = vadd.f32 0.0, %v1169
        %v1171 = vpop.f32.mrb[0].mxu0
        %1172 = vmatprep.mubr.f32.mxu0 %v1098
        %1173 = vmatmul.mubr.f32.gmra.mrb[0].mxu0 %v1097
        %v1174 = vpop.f32.mrb[0].mxu0
        %v1175 = vadd.f32 0.0, %v1174
        %v1176 = vpop.f32.mrb[0].mxu0
        %1177 = vmatprep.mubr.f32.mxu0 %v1100
        %1178 = vmatmul.mubr.f32.gmra.mrb[0].mxu0 %v1099
        %v1179 = vpop.f32.mrb[0].mxu0
        %v1180 = vadd.f32 0.0, %v1179
        %v1181 = vpop.f32.mrb[0].mxu0
        %1182 = vmatprep.mubr.f32.mxu0 %v1102
        %1183 = vmatmul.mubr.f32.gmra.mrb[0].mxu0 %v1101
        %v1184 = vpop.f32.mrb[0].mxu0
        %v1185 = vadd.f32 0.0, %v1184
        %v1186 = vpop.f32.mrb[0].mxu0
        %1187 = vdwg.mxu0
        %s1188 = scalar_lea.vmem %s301, 32
        %1189 = vst.msk [vmem:[%s1188] sm:$0xff] %vm354, %v1170
        %1190 = vst.msk [vmem:[%s1188 + $0x8] sm:$0xff] %vm354, %v1175
        %1191 = vst.msk [vmem:[%s1188 + $0x10] sm:$0xff] %vm354, %v1180
        %1192 = vst.msk [vmem:[%s1188 + $0x18] sm:$0x1] %vm778, %v1185
        %s1193 = scalar_lea.vmem %s308, 64
        %1194 = vst [vmem:[%s1193] sm:$0xff] %v1095
        %1195 = vst [vmem:[%s1193 + $0x8] sm:$0xff] %v1096
        %1196 = vst [vmem:[%s1193 + $0x10] sm:$0xff] %v1097
        %1197 = vst [vmem:[%s1193 + $0x18] sm:$0xff] %v1098
        %1198 = vst [vmem:[%s1193 + $0x20] sm:$0xff] %v1099
        %1199 = vst [vmem:[%s1193 + $0x28] sm:$0xff] %v1100
        %1200 = vst [vmem:[%s1193 + $0x30] sm:$0x1] %v1101
        %1201 = vst [vmem:[%s1193 + $0x38] sm:$0x1] %v1102
        %s1202 = scalar_lea.vmem %s261, 256 [#allocation7]
        %v1203 = vld [vmem:[%s1202] sm:$0xff]
        %v1204 = vld [vmem:[%s1202 + $0x8] sm:$0xff]
        %v1205 = vld [vmem:[%s1202 + $0x10] sm:$0xff]
        %v1206 = vld [vmem:[%s1202 + $0x18] sm:$0xff]
        %v1207 = vld [vmem:[%s1202 + $0x20] sm:$0xff]
        %v1208 = vld [vmem:[%s1202 + $0x28] sm:$0xff]
        %v1209 = vld [vmem:[%s1202 + $0x30] sm:$0xff]
        %v1210 = vld [vmem:[%s1202 + $0x38] sm:$0xff]
        %v1211 = vld [vmem:[%s1202 + $0x40] sm:$0xff]
        %v1212 = vld [vmem:[%s1202 + $0x48] sm:$0xff]
        %v1213 = vld [vmem:[%s1202 + $0x50] sm:$0xff]
        %v1214 = vld [vmem:[%s1202 + $0x58] sm:$0xff]
        %v1215 = vld [vmem:[%s1202 + $0x60] sm:$0xff]
        %v1216 = vld [vmem:[%s1202 + $0x68] sm:$0xff]
        %v1217 = vld [vmem:[%s1202 + $0x70] sm:$0xff]
        %v1218 = vld [vmem:[%s1202 + $0x78] sm:$0xff]
        %1219 = vmatprep.subr.mxu0 %v1204
        %1220 = vmatpush1.msra.mxu0 %v1203
        %1221 = vmatprep.subr.mxu0 %v1206
        %1222 = vmatpush1.msra.mxu0 %v1205
        %1223 = vmatprep.subr.mxu0 %v1208
        %1224 = vmatpush1.msra.mxu0 %v1207
        %1225 = vmatprep.subr.mxu0 %v1210
        %1226 = vmatpush1.msra.mxu0 %v1209
        %1227 = vmatprep.subr.mxu0 %v1212
        %1228 = vmatpush1.msra.mxu0 %v1211
        %1229 = vmatprep.subr.mxu0 %v1214
        %1230 = vmatpush1.msra.mxu0 %v1213
        %1231 = vmatprep.subr.mxu0 %v1216
        %1232 = vmatpush1.msra.mxu0 %v1215
        %1233 = vmatprep.subr.mxu0 %v1218
        %1234 = vmatpush1.msra.mxu0 %v1217
        %1235 = vmatprep.subr.mxu0 0.0
        %1236 = vmatpush1.msra.mxu0 0.0
        %1237 = vmatprep.subr.mxu0 0.0
        %1238 = vmatpush1.msra.mxu0 0.0
        %1239 = vmatprep.subr.mxu0 0.0
        %1240 = vmatpush1.msra.mxu0 0.0
        %1241 = vmatprep.subr.mxu0 0.0
        %1242 = vmatpush1.msra.mxu0 0.0
        %1243 = vmatprep.subr.mxu0 0.0
        %1244 = vmatpush1.msra.mxu0 0.0
        %1245 = vmatprep.subr.mxu0 0.0
        %1246 = vmatpush1.msra.mxu0 0.0
        %1247 = vmatprep.subr.mxu0 0.0
        %1248 = vmatpush1.msra.mxu0 0.0
        %1249 = vmatprep.subr.mxu0 0.0
        %1250 = vmatpush1.msra.mxu0 0.0
        %1251 = vmatprep.subr.mxu0 0.0
        %1252 = vmatpush1.msra.mxu0 0.0
        %1253 = vmatprep.subr.mxu0 0.0
        %1254 = vmatpush1.msra.mxu0 0.0
        %1255 = vmatprep.subr.mxu0 0.0
        %1256 = vmatpush1.msra.mxu0 0.0
        %1257 = vmatprep.subr.mxu0 0.0
        %1258 = vmatpush1.msra.mxu0 0.0
        %1259 = vmatprep.subr.mxu0 0.0
        %1260 = vmatpush1.msra.mxu0 0.0
        %1261 = vmatprep.subr.mxu0 0.0
        %1262 = vmatpush1.msra.mxu0 0.0
        %1263 = vmatprep.subr.mxu0 0.0
        %1264 = vmatpush1.msra.mxu0 0.0
        %1265 = vmatprep.subr.mxu0 0.0
        %1266 = vmatpush1.msra.mxu0 0.0
        %1267 = vmatprep.subr.mxu0 0.0
        %1268 = vmatpush1.msra.mxu0 0.0
        %1269 = vmatprep.subr.mxu0 0.0
        %1270 = vmatpush1.msra.mxu0 0.0
        %1271 = vmatprep.subr.mxu0 0.0
        %1272 = vmatpush1.msra.mxu0 0.0
        %1273 = vmatprep.subr.mxu0 0.0
        %1274 = vmatpush1.msra.mxu0 0.0
        %1275 = vmatprep.subr.mxu0 0.0
        %1276 = vmatpush1.msra.mxu0 0.0
        %1277 = vmatprep.subr.mxu0 0.0
        %1278 = vmatpush1.msra.mxu0 0.0
        %1279 = vmatprep.subr.mxu0 0.0
        %1280 = vmatpush1.msra.mxu0 0.0
        %1281 = vmatprep.subr.mxu0 0.0
        %1282 = vmatpush1.msra.mxu0 0.0
        %1283 = vmatprep.mubr.f32.mxu0 0.0
        %1284 = vmatmul.mubr.f32.gmra.mrb[0].mxu0 %v356
        %v1285 = vpop.f32.mrb[0].mxu0
        %v1286 = vadd.f32 0.0, %v1285
        %v1287 = vpop.f32.mrb[0].mxu0
        %v1288 = vadd.f32 0.0, %v1287
        %1289 = vmatprep.mubr.f32.mxu0 0.0
        %1290 = vmatmul.mubr.f32.gmra.mrb[0].mxu0 %v359
        %v1291 = vpop.f32.mrb[0].mxu0
        %v1292 = vadd.f32 0.0, %v1291
        %v1293 = vpop.f32.mrb[0].mxu0
        %v1294 = vadd.f32 0.0, %v1293
        %1295 = vmatprep.mubr.f32.mxu0 0.0
        %1296 = vmatmul.mubr.f32.gmra.mrb[0].mxu0 %v362
        %v1297 = vpop.f32.mrb[0].mxu0
        %v1298 = vadd.f32 0.0, %v1297
        %v1299 = vpop.f32.mrb[0].mxu0
        %v1300 = vadd.f32 0.0, %v1299
        %1301 = vmatprep.mubr.f32.mxu0 0.0
        %1302 = vmatmul.mubr.f32.gmra.mrb[0].mxu0 %v365
        %v1303 = vpop.f32.mrb[0].mxu0
        %v1304 = vadd.f32 0.0, %v1303
        %v1305 = vpop.f32.mrb[0].mxu0
        %v1306 = vadd.f32 0.0, %v1305
        %1307 = vmatprep.mubr.f32.mxu0 0.0
        %1308 = vmatmul.mubr.f32.gmra.mrb[0].mxu0 %v368
        %v1309 = vpop.f32.mrb[0].mxu0
        %v1310 = vadd.f32 0.0, %v1309
        %v1311 = vpop.f32.mrb[0].mxu0
        %v1312 = vadd.f32 0.0, %v1311
        %1313 = vmatprep.mubr.f32.mxu0 0.0
        %1314 = vmatmul.mubr.f32.gmra.mrb[0].mxu0 %v371
        %v1315 = vpop.f32.mrb[0].mxu0
        %v1316 = vadd.f32 0.0, %v1315
        %v1317 = vpop.f32.mrb[0].mxu0
        %v1318 = vadd.f32 0.0, %v1317
        %1319 = vmatprep.mubr.f32.mxu0 0.0
        %1320 = vmatmul.mubr.f32.gmra.mrb[0].mxu0 %v374
        %v1321 = vpop.f32.mrb[0].mxu0
        %v1322 = vadd.f32 0.0, %v1321
        %v1323 = vpop.f32.mrb[0].mxu0
        %v1324 = vadd.f32 0.0, %v1323
        %1325 = vmatprep.mubr.f32.mxu0 0.0
        %1326 = vmatmul.mubr.f32.gmra.mrb[0].mxu0 %v377
        %v1327 = vpop.f32.mrb[0].mxu0
        %v1328 = vadd.f32 0.0, %v1327
        %v1329 = vpop.f32.mrb[0].mxu0
        %v1330 = vadd.f32 0.0, %v1329
        %1331 = vdwg.mxu0
        %v1332 = vadd.f32 %v310, %v1286
        %v1333 = vadd.f32 %v311, %v1288
        %v1334 = vadd.f32 %v312, %v1292
        %v1335 = vadd.f32 %v313, %v1294
        %v1336 = vadd.f32 %v314, %v1298
        %v1337 = vadd.f32 %v315, %v1300
        %v1338 = vadd.f32 %v316, %v1304
        %v1339 = vadd.f32 %v317, %v1306
        %v1340 = vadd.f32 %v318, %v1310
        %v1341 = vadd.f32 %v319, %v1312
        %v1342 = vadd.f32 %v320, %v1316
        %v1343 = vadd.f32 %v321, %v1318
        %v1344 = vadd.f32 %v322, %v1322
        %v1345 = vadd.f32 %v323, %v1324
        %v1346 = vadd.f32 %v324, %v1328
        %v1347 = vadd.f32 %v325, %v1330
        %v1348 = vtanh.pop %v1332
        %v1349 = vtanh.pop %v1333
        %v1350 = vtanh.pop %v1334
        %v1351 = vtanh.pop %v1335
        %v1352 = vtanh.pop %v1336
        %v1353 = vtanh.pop %v1337
        %v1354 = vtanh.pop %v1338
        %v1355 = vtanh.pop %v1339
        %v1356 = vtanh.pop %v1340
        %v1357 = vtanh.pop %v1341
        %v1358 = vtanh.pop %v1342
        %v1359 = vtanh.pop %v1343
        %v1360 = vtanh.pop %v1344
        %v1361 = vtanh.pop %v1345
        %v1362 = vtanh.pop %v1346
        %v1363 = vtanh.pop %v1347
        %1364 = vmatprep.subr.mxu0 %v1349
        %1365 = vmatpush1.msra.mxu0 %v1348
        %1366 = vmatprep.subr.mxu0 %v1351
        %1367 = vmatpush1.msra.mxu0 %v1350
        %1368 = vmatprep.subr.mxu0 %v1353
        %1369 = vmatpush1.msra.mxu0 %v1352
        %1370 = vmatprep.subr.mxu0 %v1355
        %1371 = vmatpush1.msra.mxu0 %v1354
        %1372 = vmatprep.subr.mxu0 %v1357
        %1373 = vmatpush1.msra.mxu0 %v1356
        %1374 = vmatprep.subr.mxu0 %v1359
        %1375 = vmatpush1.msra.mxu0 %v1358
        %1376 = vmatprep.subr.mxu0 %v1361
        %1377 = vmatpush1.msra.mxu0 %v1360
        %1378 = vmatprep.subr.mxu0 %v1363
        %1379 = vmatpush1.msra.mxu0 %v1362
        %1380 = vmatprep.subr.mxu0 0.0
        %1381 = vmatpush1.msra.mxu0 0.0
        %1382 = vmatprep.subr.mxu0 0.0
        %1383 = vmatpush1.msra.mxu0 0.0
        %1384 = vmatprep.subr.mxu0 0.0
        %1385 = vmatpush1.msra.mxu0 0.0
        %1386 = vmatprep.subr.mxu0 0.0
        %1387 = vmatpush1.msra.mxu0 0.0
        %1388 = vmatprep.subr.mxu0 0.0
        %1389 = vmatpush1.msra.mxu0 0.0
        %1390 = vmatprep.subr.mxu0 0.0
        %1391 = vmatpush1.msra.mxu0 0.0
        %1392 = vmatprep.subr.mxu0 0.0
        %1393 = vmatpush1.msra.mxu0 0.0
        %1394 = vmatprep.subr.mxu0 0.0
        %1395 = vmatpush1.msra.mxu0 0.0
        %1396 = vmatprep.subr.mxu0 0.0
        %1397 = vmatpush1.msra.mxu0 0.0
        %1398 = vmatprep.subr.mxu0 0.0
        %1399 = vmatpush1.msra.mxu0 0.0
        %1400 = vmatprep.subr.mxu0 0.0
        %1401 = vmatpush1.msra.mxu0 0.0
        %1402 = vmatprep.subr.mxu0 0.0
        %1403 = vmatpush1.msra.mxu0 0.0
        %1404 = vmatprep.subr.mxu0 0.0
        %1405 = vmatpush1.msra.mxu0 0.0
        %1406 = vmatprep.subr.mxu0 0.0
        %1407 = vmatpush1.msra.mxu0 0.0
        %1408 = vmatprep.subr.mxu0 0.0
        %1409 = vmatpush1.msra.mxu0 0.0
        %1410 = vmatprep.subr.mxu0 0.0
        %1411 = vmatpush1.msra.mxu0 0.0
        %1412 = vmatprep.subr.mxu0 0.0
        %1413 = vmatpush1.msra.mxu0 0.0
        %1414 = vmatprep.subr.mxu0 0.0
        %1415 = vmatpush1.msra.mxu0 0.0
        %1416 = vmatprep.subr.mxu0 0.0
        %1417 = vmatpush1.msra.mxu0 0.0
        %1418 = vmatprep.subr.mxu0 0.0
        %1419 = vmatpush1.msra.mxu0 0.0
        %1420 = vmatprep.subr.mxu0 0.0
        %1421 = vmatpush1.msra.mxu0 0.0
        %1422 = vmatprep.subr.mxu0 0.0
        %1423 = vmatpush1.msra.mxu0 0.0
        %1424 = vmatprep.subr.mxu0 0.0
        %1425 = vmatpush1.msra.mxu0 0.0
        %1426 = vmatprep.subr.mxu0 0.0
        %1427 = vmatpush1.msra.mxu0 0.0
        %1428 = vmatprep.mubr.f32.mxu0 0.0
        %1429 = vmatmul.mubr.f32.gmra.mrb[0].mxu0 %v525
        %v1430 = vpop.f32.mrb[0].mxu0
        %v1431 = vadd.f32 0.0, %v1430
        %v1432 = vpop.f32.mrb[0].mxu0
        %v1433 = vadd.f32 0.0, %v1432
        %1434 = vmatprep.mubr.f32.mxu0 0.0
        %1435 = vmatmul.mubr.f32.gmra.mrb[0].mxu0 %v528
        %v1436 = vpop.f32.mrb[0].mxu0
        %v1437 = vadd.f32 0.0, %v1436
        %v1438 = vpop.f32.mrb[0].mxu0
        %v1439 = vadd.f32 0.0, %v1438
        %1440 = vmatprep.mubr.f32.mxu0 0.0
        %1441 = vmatmul.mubr.f32.gmra.mrb[0].mxu0 %v531
        %v1442 = vpop.f32.mrb[0].mxu0
        %v1443 = vadd.f32 0.0, %v1442
        %v1444 = vpop.f32.mrb[0].mxu0
        %v1445 = vadd.f32 0.0, %v1444
        %1446 = vmatprep.mubr.f32.mxu0 0.0
        %1447 = vmatmul.mubr.f32.gmra.mrb[0].mxu0 %v534
        %v1448 = vpop.f32.mrb[0].mxu0
        %v1449 = vadd.f32 0.0, %v1448
        %v1450 = vpop.f32.mrb[0].mxu0
        %v1451 = vadd.f32 0.0, %v1450
        %1452 = vdwg.mxu0
        %v1453 = vmax.f32 %v1431, %v1433
        %1454 = vmax.xlane.f32.xlu0 %v1453
        %v1455 = vpop.xlane.xlu0 %1454
        %v1456 = vmax.f32 %v1437, %v1439
        %1457 = vmax.xlane.f32.xlu0 %v1456
        %v1458 = vpop.xlane.xlu0 %1457
        %v1459 = vmax.f32 %v1443, %v1445
        %1460 = vmax.xlane.f32.xlu0 %v1459
        %v1461 = vpop.xlane.xlu0 %1460
        %v1462 = vsel %vm634, %v1449, -inf
        %v1463 = vsel %vm634, %v1451, -inf
        %v1464 = vmax.f32 %v1462, %v1463
        %1465 = vmax.xlane.f32.xlu0 %v1464
        %v1466 = vpop.xlane.xlu0 %1465
        %v1467 = vsub.f32 %v1431, %v1455
        %v1468 = vsub.f32 %v1433, %v1455
        %v1469 = vsub.f32 %v1437, %v1458
        %v1470 = vsub.f32 %v1439, %v1458
        %v1471 = vsub.f32 %v1443, %v1461
        %v1472 = vsub.f32 %v1445, %v1461
        %v1473 = vsub.f32 %v1449, %v1466
        %v1474 = vsub.f32 %v1451, %v1466
        %v1475 = vmul.f32 %v1467, 1.442695
        %v1476 = vpow.pop %v1475
        %v1477 = vmul.f32 %v1468, 1.442695
        %v1478 = vpow.pop %v1477
        %v1479 = vmul.f32 %v1469, 1.442695
        %v1480 = vpow.pop %v1479
        %v1481 = vmul.f32 %v1470, 1.442695
        %v1482 = vpow.pop %v1481
        %v1483 = vmul.f32 %v1471, 1.442695
        %v1484 = vpow.pop %v1483
        %v1485 = vmul.f32 %v1472, 1.442695
        %v1486 = vpow.pop %v1485
        %v1487 = vmul.f32 %v1473, 1.442695
        %v1488 = vpow.pop %v1487
        %v1489 = vmul.f32 %v1474, 1.442695
        %v1490 = vpow.pop %v1489
        %v1491 = vadd.f32 %v1476, %v1478
        %1492 = vadd.xlane.f32.xlu0 %v1491
        %v1493 = vpop.xlane.xlu0 %1492
        %v1494 = vadd.f32 %v1480, %v1482
        %1495 = vadd.xlane.f32.xlu0 %v1494
        %v1496 = vpop.xlane.xlu0 %1495
        %v1497 = vadd.f32 %v1484, %v1486
        %1498 = vadd.xlane.f32.xlu0 %v1497
        %v1499 = vpop.xlane.xlu0 %1498
        %v1500 = vsel %vm634, %v1488, 0.0
        %v1501 = vsel %vm634, %v1490, 0.0
        %v1502 = vadd.f32 %v1500, %v1501
        %1503 = vadd.xlane.f32.xlu0 %v1502
        %v1504 = vpop.xlane.xlu0 %1503
        %v1505 = vrcp.pop %v1493
        %v1506 = vrcp.pop %v1496
        %v1507 = vrcp.pop %v1499
        %v1508 = vrcp.pop %v1504
        %v1509 = vmul.f32 %v1476, %v1505
        %v1510 = vmul.f32 %v1478, %v1505
        %v1511 = vmul.f32 %v1480, %v1506
        %v1512 = vmul.f32 %v1482, %v1506
        %v1513 = vmul.f32 %v1484, %v1507
        %v1514 = vmul.f32 %v1486, %v1507
        %v1515 = vmul.f32 %v1488, %v1508
        %v1516 = vmul.f32 %v1490, %v1508
        %1517 = vmatprep.subr.mxu0 %v1204
        %1518 = vmatpush1.xpose.msra.mxu0 %v1203
        %1519 = vmatprep.subr.mxu0 %v1206
        %1520 = vmatpush1.xpose.msra.mxu0 %v1205
        %1521 = vmatprep.subr.mxu0 %v1208
        %1522 = vmatpush1.xpose.msra.mxu0 %v1207
        %1523 = vmatprep.subr.mxu0 %v1210
        %1524 = vmatpush1.xpose.msra.mxu0 %v1209
        %1525 = vmatprep.subr.mxu0 %v1212
        %1526 = vmatpush1.xpose.msra.mxu0 %v1211
        %1527 = vmatprep.subr.mxu0 %v1214
        %1528 = vmatpush1.xpose.msra.mxu0 %v1213
        %1529 = vmatprep.subr.mxu0 %v1216
        %1530 = vmatpush1.xpose.msra.mxu0 %v1215
        %1531 = vmatprep.subr.mxu0 %v1218
        %1532 = vmatpush1.xpose.msra.mxu0 %v1217
        %1533 = vmatprep.subr.mxu0 0.0
        %1534 = vmatpush1.xpose.msra.mxu0 0.0
        %1535 = vmatprep.subr.mxu0 0.0
        %1536 = vmatpush1.xpose.msra.mxu0 0.0
        %1537 = vmatprep.subr.mxu0 0.0
        %1538 = vmatpush1.xpose.msra.mxu0 0.0
        %1539 = vmatprep.subr.mxu0 0.0
        %1540 = vmatpush1.xpose.msra.mxu0 0.0
        %1541 = vmatprep.subr.mxu0 0.0
        %1542 = vmatpush1.xpose.msra.mxu0 0.0
        %1543 = vmatprep.subr.mxu0 0.0
        %1544 = vmatpush1.xpose.msra.mxu0 0.0
        %1545 = vmatprep.subr.mxu0 0.0
        %1546 = vmatpush1.xpose.msra.mxu0 0.0
        %1547 = vmatprep.subr.mxu0 0.0
        %1548 = vmatpush1.xpose.msra.mxu0 0.0
        %1549 = vmatprep.subr.mxu0 0.0
        %1550 = vmatpush1.xpose.msra.mxu0 0.0
        %1551 = vmatprep.subr.mxu0 0.0
        %1552 = vmatpush1.xpose.msra.mxu0 0.0
        %1553 = vmatprep.subr.mxu0 0.0
        %1554 = vmatpush1.xpose.msra.mxu0 0.0
        %1555 = vmatprep.subr.mxu0 0.0
        %1556 = vmatpush1.xpose.msra.mxu0 0.0
        %1557 = vmatprep.subr.mxu0 0.0
        %1558 = vmatpush1.xpose.msra.mxu0 0.0
        %1559 = vmatprep.subr.mxu0 0.0
        %1560 = vmatpush1.xpose.msra.mxu0 0.0
        %1561 = vmatprep.subr.mxu0 0.0
        %1562 = vmatpush1.xpose.msra.mxu0 0.0
        %1563 = vmatprep.subr.mxu0 0.0
        %1564 = vmatpush1.xpose.msra.mxu0 0.0
        %1565 = vmatprep.subr.mxu0 0.0
        %1566 = vmatpush1.xpose.msra.mxu0 0.0
        %1567 = vmatprep.subr.mxu0 0.0
        %1568 = vmatpush1.xpose.msra.mxu0 0.0
        %1569 = vmatprep.subr.mxu0 0.0
        %1570 = vmatpush1.xpose.msra.mxu0 0.0
        %1571 = vmatprep.subr.mxu0 0.0
        %1572 = vmatpush1.xpose.msra.mxu0 0.0
        %1573 = vmatprep.subr.mxu0 0.0
        %1574 = vmatpush1.xpose.msra.mxu0 0.0
        %1575 = vmatprep.subr.mxu0 0.0
        %1576 = vmatpush1.xpose.msra.mxu0 0.0
        %1577 = vmatprep.subr.mxu0 0.0
        %1578 = vmatpush1.xpose.msra.mxu0 0.0
        %1579 = vmatprep.subr.mxu0 0.0
        %1580 = vmatpush1.xpose.msra.mxu0 0.0
        %1581 = vmatprep.mubr.f32.mxu0 %v1510
        %1582 = vmatmul.mubr.f32.gmra.mrb[0].mxu0 %v1509
        %v1583 = vpop.f32.mrb[0].mxu0
        %v1584 = vadd.f32 0.0, %v1583
        %v1585 = vpop.f32.mrb[0].mxu0
        %1586 = vmatprep.mubr.f32.mxu0 %v1512
        %1587 = vmatmul.mubr.f32.gmra.mrb[0].mxu0 %v1511
        %v1588 = vpop.f32.mrb[0].mxu0
        %v1589 = vadd.f32 0.0, %v1588
        %v1590 = vpop.f32.mrb[0].mxu0
        %1591 = vmatprep.mubr.f32.mxu0 %v1514
        %1592 = vmatmul.mubr.f32.gmra.mrb[0].mxu0 %v1513
        %v1593 = vpop.f32.mrb[0].mxu0
        %v1594 = vadd.f32 0.0, %v1593
        %v1595 = vpop.f32.mrb[0].mxu0
        %1596 = vmatprep.mubr.f32.mxu0 %v1516
        %1597 = vmatmul.mubr.f32.gmra.mrb[0].mxu0 %v1515
        %v1598 = vpop.f32.mrb[0].mxu0
        %v1599 = vadd.f32 0.0, %v1598
        %v1600 = vpop.f32.mrb[0].mxu0
        %1601 = vdwg.mxu0
        %s1602 = scalar_lea.vmem %s301, 64
        %1603 = vst.msk [vmem:[%s1602] sm:$0xff] %vm354, %v1584
        %1604 = vst.msk [vmem:[%s1602 + $0x8] sm:$0xff] %vm354, %v1589
        %1605 = vst.msk [vmem:[%s1602 + $0x10] sm:$0xff] %vm354, %v1594
        %1606 = vst.msk [vmem:[%s1602 + $0x18] sm:$0x1] %vm778, %v1599
        %s1607 = scalar_lea.vmem %s308, 128
        %1608 = vst [vmem:[%s1607] sm:$0xff] %v1509
        %1609 = vst [vmem:[%s1607 + $0x8] sm:$0xff] %v1510
        %1610 = vst [vmem:[%s1607 + $0x10] sm:$0xff] %v1511
        %1611 = vst [vmem:[%s1607 + $0x18] sm:$0xff] %v1512
        %1612 = vst [vmem:[%s1607 + $0x20] sm:$0xff] %v1513
        %1613 = vst [vmem:[%s1607 + $0x28] sm:$0xff] %v1514
        %1614 = vst [vmem:[%s1607 + $0x30] sm:$0x1] %v1515
        %1615 = vst [vmem:[%s1607 + $0x38] sm:$0x1] %v1516
        %s1616 = scalar_lea.vmem %s261, 384 [#allocation7]
        %v1617 = vld [vmem:[%s1616] sm:$0xff]
        %v1618 = vld [vmem:[%s1616 + $0x8] sm:$0xff]
        %v1619 = vld [vmem:[%s1616 + $0x10] sm:$0xff]
        %v1620 = vld [vmem:[%s1616 + $0x18] sm:$0xff]
        %v1621 = vld [vmem:[%s1616 + $0x20] sm:$0xff]
        %v1622 = vld [vmem:[%s1616 + $0x28] sm:$0xff]
        %v1623 = vld [vmem:[%s1616 + $0x30] sm:$0xff]
        %v1624 = vld [vmem:[%s1616 + $0x38] sm:$0xff]
        %v1625 = vld [vmem:[%s1616 + $0x40] sm:$0xff]
        %v1626 = vld [vmem:[%s1616 + $0x48] sm:$0xff]
        %v1627 = vld [vmem:[%s1616 + $0x50] sm:$0xff]
        %v1628 = vld [vmem:[%s1616 + $0x58] sm:$0xff]
        %v1629 = vld [vmem:[%s1616 + $0x60] sm:$0xff]
        %v1630 = vld [vmem:[%s1616 + $0x68] sm:$0xff]
        %v1631 = vld [vmem:[%s1616 + $0x70] sm:$0xff]
        %v1632 = vld [vmem:[%s1616 + $0x78] sm:$0xff]
        %1633 = vmatprep.subr.mxu0 %v1618
        %1634 = vmatpush1.msra.mxu0 %v1617
        %1635 = vmatprep.subr.mxu0 %v1620
        %1636 = vmatpush1.msra.mxu0 %v1619
        %1637 = vmatprep.subr.mxu0 %v1622
        %1638 = vmatpush1.msra.mxu0 %v1621
        %1639 = vmatprep.subr.mxu0 %v1624
        %1640 = vmatpush1.msra.mxu0 %v1623
        %1641 = vmatprep.subr.mxu0 %v1626
        %1642 = vmatpush1.msra.mxu0 %v1625
        %1643 = vmatprep.subr.mxu0 %v1628
        %1644 = vmatpush1.msra.mxu0 %v1627
        %1645 = vmatprep.subr.mxu0 %v1630
        %1646 = vmatpush1.msra.mxu0 %v1629
        %1647 = vmatprep.subr.mxu0 %v1632
        %1648 = vmatpush1.msra.mxu0 %v1631
        %1649 = vmatprep.subr.mxu0 0.0
        %1650 = vmatpush1.msra.mxu0 0.0
        %1651 = vmatprep.subr.mxu0 0.0
        %1652 = vmatpush1.msra.mxu0 0.0
        %1653 = vmatprep.subr.mxu0 0.0
        %1654 = vmatpush1.msra.mxu0 0.0
        %1655 = vmatprep.subr.mxu0 0.0
        %1656 = vmatpush1.msra.mxu0 0.0
        %1657 = vmatprep.subr.mxu0 0.0
        %1658 = vmatpush1.msra.mxu0 0.0
        %1659 = vmatprep.subr.mxu0 0.0
        %1660 = vmatpush1.msra.mxu0 0.0
        %1661 = vmatprep.subr.mxu0 0.0
        %1662 = vmatpush1.msra.mxu0 0.0
        %1663 = vmatprep.subr.mxu0 0.0
        %1664 = vmatpush1.msra.mxu0 0.0
        %1665 = vmatprep.subr.mxu0 0.0
        %1666 = vmatpush1.msra.mxu0 0.0
        %1667 = vmatprep.subr.mxu0 0.0
        %1668 = vmatpush1.msra.mxu0 0.0
        %1669 = vmatprep.subr.mxu0 0.0
        %1670 = vmatpush1.msra.mxu0 0.0
        %1671 = vmatprep.subr.mxu0 0.0
        %1672 = vmatpush1.msra.mxu0 0.0
        %1673 = vmatprep.subr.mxu0 0.0
        %1674 = vmatpush1.msra.mxu0 0.0
        %1675 = vmatprep.subr.mxu0 0.0
        %1676 = vmatpush1.msra.mxu0 0.0
        %1677 = vmatprep.subr.mxu0 0.0
        %1678 = vmatpush1.msra.mxu0 0.0
        %1679 = vmatprep.subr.mxu0 0.0
        %1680 = vmatpush1.msra.mxu0 0.0
        %1681 = vmatprep.subr.mxu0 0.0
        %1682 = vmatpush1.msra.mxu0 0.0
        %1683 = vmatprep.subr.mxu0 0.0
        %1684 = vmatpush1.msra.mxu0 0.0
        %1685 = vmatprep.subr.mxu0 0.0
        %1686 = vmatpush1.msra.mxu0 0.0
        %1687 = vmatprep.subr.mxu0 0.0
        %1688 = vmatpush1.msra.mxu0 0.0
        %1689 = vmatprep.subr.mxu0 0.0
        %1690 = vmatpush1.msra.mxu0 0.0
        %1691 = vmatprep.subr.mxu0 0.0
        %1692 = vmatpush1.msra.mxu0 0.0
        %1693 = vmatprep.subr.mxu0 0.0
        %1694 = vmatpush1.msra.mxu0 0.0
        %1695 = vmatprep.subr.mxu0 0.0
        %1696 = vmatpush1.msra.mxu0 0.0
        %1697 = vmatprep.mubr.f32.mxu0 0.0
        %1698 = vmatmul.mubr.f32.gmra.mrb[0].mxu0 %v356
        %v1699 = vpop.f32.mrb[0].mxu0
        %v1700 = vadd.f32 0.0, %v1699
        %v1701 = vpop.f32.mrb[0].mxu0
        %v1702 = vadd.f32 0.0, %v1701
        %1703 = vmatprep.mubr.f32.mxu0 0.0
        %1704 = vmatmul.mubr.f32.gmra.mrb[0].mxu0 %v359
        %v1705 = vpop.f32.mrb[0].mxu0
        %v1706 = vadd.f32 0.0, %v1705
        %v1707 = vpop.f32.mrb[0].mxu0
        %v1708 = vadd.f32 0.0, %v1707
        %1709 = vmatprep.mubr.f32.mxu0 0.0
        %1710 = vmatmul.mubr.f32.gmra.mrb[0].mxu0 %v362
        %v1711 = vpop.f32.mrb[0].mxu0
        %v1712 = vadd.f32 0.0, %v1711
        %v1713 = vpop.f32.mrb[0].mxu0
        %v1714 = vadd.f32 0.0, %v1713
        %1715 = vmatprep.mubr.f32.mxu0 0.0
        %1716 = vmatmul.mubr.f32.gmra.mrb[0].mxu0 %v365
        %v1717 = vpop.f32.mrb[0].mxu0
        %v1718 = vadd.f32 0.0, %v1717
        %v1719 = vpop.f32.mrb[0].mxu0
        %v1720 = vadd.f32 0.0, %v1719
        %1721 = vmatprep.mubr.f32.mxu0 0.0
        %1722 = vmatmul.mubr.f32.gmra.mrb[0].mxu0 %v368
        %v1723 = vpop.f32.mrb[0].mxu0
        %v1724 = vadd.f32 0.0, %v1723
        %v1725 = vpop.f32.mrb[0].mxu0
        %v1726 = vadd.f32 0.0, %v1725
        %1727 = vmatprep.mubr.f32.mxu0 0.0
        %1728 = vmatmul.mubr.f32.gmra.mrb[0].mxu0 %v371
        %v1729 = vpop.f32.mrb[0].mxu0
        %v1730 = vadd.f32 0.0, %v1729
        %v1731 = vpop.f32.mrb[0].mxu0
        %v1732 = vadd.f32 0.0, %v1731
        %1733 = vmatprep.mubr.f32.mxu0 0.0
        %1734 = vmatmul.mubr.f32.gmra.mrb[0].mxu0 %v374
        %v1735 = vpop.f32.mrb[0].mxu0
        %v1736 = vadd.f32 0.0, %v1735
        %v1737 = vpop.f32.mrb[0].mxu0
        %v1738 = vadd.f32 0.0, %v1737
        %1739 = vmatprep.mubr.f32.mxu0 0.0
        %1740 = vmatmul.mubr.f32.gmra.mrb[0].mxu0 %v377
        %v1741 = vpop.f32.mrb[0].mxu0
        %v1742 = vadd.f32 0.0, %v1741
        %v1743 = vpop.f32.mrb[0].mxu0
        %v1744 = vadd.f32 0.0, %v1743
        %1745 = vdwg.mxu0
        %v1746 = vadd.f32 %v310, %v1700
        %v1747 = vadd.f32 %v311, %v1702
        %v1748 = vadd.f32 %v312, %v1706
        %v1749 = vadd.f32 %v313, %v1708
        %v1750 = vadd.f32 %v314, %v1712
        %v1751 = vadd.f32 %v315, %v1714
        %v1752 = vadd.f32 %v316, %v1718
        %v1753 = vadd.f32 %v317, %v1720
        %v1754 = vadd.f32 %v318, %v1724
        %v1755 = vadd.f32 %v319, %v1726
        %v1756 = vadd.f32 %v320, %v1730
        %v1757 = vadd.f32 %v321, %v1732
        %v1758 = vadd.f32 %v322, %v1736
        %v1759 = vadd.f32 %v323, %v1738
        %v1760 = vadd.f32 %v324, %v1742
        %v1761 = vadd.f32 %v325, %v1744
        %v1762 = vtanh.pop %v1746
        %v1763 = vtanh.pop %v1747
        %v1764 = vtanh.pop %v1748
        %v1765 = vtanh.pop %v1749
        %v1766 = vtanh.pop %v1750
        %v1767 = vtanh.pop %v1751
        %v1768 = vtanh.pop %v1752
        %v1769 = vtanh.pop %v1753
        %v1770 = vtanh.pop %v1754
        %v1771 = vtanh.pop %v1755
        %v1772 = vtanh.pop %v1756
        %v1773 = vtanh.pop %v1757
        %v1774 = vtanh.pop %v1758
        %v1775 = vtanh.pop %v1759
        %v1776 = vtanh.pop %v1760
        %v1777 = vtanh.pop %v1761
        %1778 = vmatprep.subr.mxu0 %v1763
        %1779 = vmatpush1.msra.mxu0 %v1762
        %1780 = vmatprep.subr.mxu0 %v1765
        %1781 = vmatpush1.msra.mxu0 %v1764
        %1782 = vmatprep.subr.mxu0 %v1767
        %1783 = vmatpush1.msra.mxu0 %v1766
        %1784 = vmatprep.subr.mxu0 %v1769
        %1785 = vmatpush1.msra.mxu0 %v1768
        %1786 = vmatprep.subr.mxu0 %v1771
        %1787 = vmatpush1.msra.mxu0 %v1770
        %1788 = vmatprep.subr.mxu0 %v1773
        %1789 = vmatpush1.msra.mxu0 %v1772
        %1790 = vmatprep.subr.mxu0 %v1775
        %1791 = vmatpush1.msra.mxu0 %v1774
        %1792 = vmatprep.subr.mxu0 %v1777
        %1793 = vmatpush1.msra.mxu0 %v1776
        %1794 = vmatprep.subr.mxu0 0.0
        %1795 = vmatpush1.msra.mxu0 0.0
        %1796 = vmatprep.subr.mxu0 0.0
        %1797 = vmatpush1.msra.mxu0 0.0
        %1798 = vmatprep.subr.mxu0 0.0
        %1799 = vmatpush1.msra.mxu0 0.0
        %1800 = vmatprep.subr.mxu0 0.0
        %1801 = vmatpush1.msra.mxu0 0.0
        %1802 = vmatprep.subr.mxu0 0.0
        %1803 = vmatpush1.msra.mxu0 0.0
        %1804 = vmatprep.subr.mxu0 0.0
        %1805 = vmatpush1.msra.mxu0 0.0
        %1806 = vmatprep.subr.mxu0 0.0
        %1807 = vmatpush1.msra.mxu0 0.0
        %1808 = vmatprep.subr.mxu0 0.0
        %1809 = vmatpush1.msra.mxu0 0.0
        %1810 = vmatprep.subr.mxu0 0.0
        %1811 = vmatpush1.msra.mxu0 0.0
        %1812 = vmatprep.subr.mxu0 0.0
        %1813 = vmatpush1.msra.mxu0 0.0
        %1814 = vmatprep.subr.mxu0 0.0
        %1815 = vmatpush1.msra.mxu0 0.0
        %1816 = vmatprep.subr.mxu0 0.0
        %1817 = vmatpush1.msra.mxu0 0.0
        %1818 = vmatprep.subr.mxu0 0.0
        %1819 = vmatpush1.msra.mxu0 0.0
        %1820 = vmatprep.subr.mxu0 0.0
        %1821 = vmatpush1.msra.mxu0 0.0
        %1822 = vmatprep.subr.mxu0 0.0
        %1823 = vmatpush1.msra.mxu0 0.0
        %1824 = vmatprep.subr.mxu0 0.0
        %1825 = vmatpush1.msra.mxu0 0.0
        %1826 = vmatprep.subr.mxu0 0.0
        %1827 = vmatpush1.msra.mxu0 0.0
        %1828 = vmatprep.subr.mxu0 0.0
        %1829 = vmatpush1.msra.mxu0 0.0
        %1830 = vmatprep.subr.mxu0 0.0
        %1831 = vmatpush1.msra.mxu0 0.0
        %1832 = vmatprep.subr.mxu0 0.0
        %1833 = vmatpush1.msra.mxu0 0.0
        %1834 = vmatprep.subr.mxu0 0.0
        %1835 = vmatpush1.msra.mxu0 0.0
        %1836 = vmatprep.subr.mxu0 0.0
        %1837 = vmatpush1.msra.mxu0 0.0
        %1838 = vmatprep.subr.mxu0 0.0
        %1839 = vmatpush1.msra.mxu0 0.0
        %1840 = vmatprep.subr.mxu0 0.0
        %1841 = vmatpush1.msra.mxu0 0.0
        %1842 = vmatprep.mubr.f32.mxu0 0.0
        %1843 = vmatmul.mubr.f32.gmra.mrb[0].mxu0 %v525
        %v1844 = vpop.f32.mrb[0].mxu0
        %v1845 = vadd.f32 0.0, %v1844
        %v1846 = vpop.f32.mrb[0].mxu0
        %v1847 = vadd.f32 0.0, %v1846
        %1848 = vmatprep.mubr.f32.mxu0 0.0
        %1849 = vmatmul.mubr.f32.gmra.mrb[0].mxu0 %v528
        %v1850 = vpop.f32.mrb[0].mxu0
        %v1851 = vadd.f32 0.0, %v1850
        %v1852 = vpop.f32.mrb[0].mxu0
        %v1853 = vadd.f32 0.0, %v1852
        %1854 = vmatprep.mubr.f32.mxu0 0.0
        %1855 = vmatmul.mubr.f32.gmra.mrb[0].mxu0 %v531
        %v1856 = vpop.f32.mrb[0].mxu0
        %v1857 = vadd.f32 0.0, %v1856
        %v1858 = vpop.f32.mrb[0].mxu0
        %v1859 = vadd.f32 0.0, %v1858
        %1860 = vmatprep.mubr.f32.mxu0 0.0
        %1861 = vmatmul.mubr.f32.gmra.mrb[0].mxu0 %v534
        %v1862 = vpop.f32.mrb[0].mxu0
        %v1863 = vadd.f32 0.0, %v1862
        %v1864 = vpop.f32.mrb[0].mxu0
        %v1865 = vadd.f32 0.0, %v1864
        %1866 = vdwg.mxu0
        %v1867 = vmax.f32 %v1845, %v1847
        %1868 = vmax.xlane.f32.xlu0 %v1867
        %v1869 = vpop.xlane.xlu0 %1868
        %v1870 = vmax.f32 %v1851, %v1853
        %1871 = vmax.xlane.f32.xlu0 %v1870
        %v1872 = vpop.xlane.xlu0 %1871
        %v1873 = vmax.f32 %v1857, %v1859
        %1874 = vmax.xlane.f32.xlu0 %v1873
        %v1875 = vpop.xlane.xlu0 %1874
        %v1876 = vsel %vm634, %v1863, -inf
        %v1877 = vsel %vm634, %v1865, -inf
        %v1878 = vmax.f32 %v1876, %v1877
        %1879 = vmax.xlane.f32.xlu0 %v1878
        %v1880 = vpop.xlane.xlu0 %1879
        %v1881 = vsub.f32 %v1845, %v1869
        %v1882 = vsub.f32 %v1847, %v1869
        %v1883 = vsub.f32 %v1851, %v1872
        %v1884 = vsub.f32 %v1853, %v1872
        %v1885 = vsub.f32 %v1857, %v1875
        %v1886 = vsub.f32 %v1859, %v1875
        %v1887 = vsub.f32 %v1863, %v1880
        %v1888 = vsub.f32 %v1865, %v1880
        %v1889 = vmul.f32 %v1881, 1.442695
        %v1890 = vpow.pop %v1889
        %v1891 = vmul.f32 %v1882, 1.442695
        %v1892 = vpow.pop %v1891
        %v1893 = vmul.f32 %v1883, 1.442695
        %v1894 = vpow.pop %v1893
        %v1895 = vmul.f32 %v1884, 1.442695
        %v1896 = vpow.pop %v1895
        %v1897 = vmul.f32 %v1885, 1.442695
        %v1898 = vpow.pop %v1897
        %v1899 = vmul.f32 %v1886, 1.442695
        %v1900 = vpow.pop %v1899
        %v1901 = vmul.f32 %v1887, 1.442695
        %v1902 = vpow.pop %v1901
        %v1903 = vmul.f32 %v1888, 1.442695
        %v1904 = vpow.pop %v1903
        %v1905 = vadd.f32 %v1890, %v1892
        %1906 = vadd.xlane.f32.xlu0 %v1905
        %v1907 = vpop.xlane.xlu0 %1906
        %v1908 = vadd.f32 %v1894, %v1896
        %1909 = vadd.xlane.f32.xlu0 %v1908
        %v1910 = vpop.xlane.xlu0 %1909
        %v1911 = vadd.f32 %v1898, %v1900
        %1912 = vadd.xlane.f32.xlu0 %v1911
        %v1913 = vpop.xlane.xlu0 %1912
        %v1914 = vsel %vm634, %v1902, 0.0
        %v1915 = vsel %vm634, %v1904, 0.0
        %v1916 = vadd.f32 %v1914, %v1915
        %1917 = vadd.xlane.f32.xlu0 %v1916
        %v1918 = vpop.xlane.xlu0 %1917
        %v1919 = vrcp.pop %v1907
        %v1920 = vrcp.pop %v1910
        %v1921 = vrcp.pop %v1913
        %v1922 = vrcp.pop %v1918
        %v1923 = vmul.f32 %v1890, %v1919
        %v1924 = vmul.f32 %v1892, %v1919
        %v1925 = vmul.f32 %v1894, %v1920
        %v1926 = vmul.f32 %v1896, %v1920
        %v1927 = vmul.f32 %v1898, %v1921
        %v1928 = vmul.f32 %v1900, %v1921
        %v1929 = vmul.f32 %v1902, %v1922
        %v1930 = vmul.f32 %v1904, %v1922
        %1931 = vmatprep.subr.mxu0 %v1618
        %1932 = vmatpush1.xpose.msra.mxu0 %v1617
        %1933 = vmatprep.subr.mxu0 %v1620
        %1934 = vmatpush1.xpose.msra.mxu0 %v1619
        %1935 = vmatprep.subr.mxu0 %v1622
        %1936 = vmatpush1.xpose.msra.mxu0 %v1621
        %1937 = vmatprep.subr.mxu0 %v1624
        %1938 = vmatpush1.xpose.msra.mxu0 %v1623
        %1939 = vmatprep.subr.mxu0 %v1626
        %1940 = vmatpush1.xpose.msra.mxu0 %v1625
        %1941 = vmatprep.subr.mxu0 %v1628
        %1942 = vmatpush1.xpose.msra.mxu0 %v1627
        %1943 = vmatprep.subr.mxu0 %v1630
        %1944 = vmatpush1.xpose.msra.mxu0 %v1629
        %1945 = vmatprep.subr.mxu0 %v1632
        %1946 = vmatpush1.xpose.msra.mxu0 %v1631
        %1947 = vmatprep.subr.mxu0 0.0
        %1948 = vmatpush1.xpose.msra.mxu0 0.0
        %1949 = vmatprep.subr.mxu0 0.0
        %1950 = vmatpush1.xpose.msra.mxu0 0.0
        %1951 = vmatprep.subr.mxu0 0.0
        %1952 = vmatpush1.xpose.msra.mxu0 0.0
        %1953 = vmatprep.subr.mxu0 0.0
        %1954 = vmatpush1.xpose.msra.mxu0 0.0
        %1955 = vmatprep.subr.mxu0 0.0
        %1956 = vmatpush1.xpose.msra.mxu0 0.0
        %1957 = vmatprep.subr.mxu0 0.0
        %1958 = vmatpush1.xpose.msra.mxu0 0.0
        %1959 = vmatprep.subr.mxu0 0.0
        %1960 = vmatpush1.xpose.msra.mxu0 0.0
        %1961 = vmatprep.subr.mxu0 0.0
        %1962 = vmatpush1.xpose.msra.mxu0 0.0
        %1963 = vmatprep.subr.mxu0 0.0
        %1964 = vmatpush1.xpose.msra.mxu0 0.0
        %1965 = vmatprep.subr.mxu0 0.0
        %1966 = vmatpush1.xpose.msra.mxu0 0.0
        %1967 = vmatprep.subr.mxu0 0.0
        %1968 = vmatpush1.xpose.msra.mxu0 0.0
        %1969 = vmatprep.subr.mxu0 0.0
        %1970 = vmatpush1.xpose.msra.mxu0 0.0
        %1971 = vmatprep.subr.mxu0 0.0
        %1972 = vmatpush1.xpose.msra.mxu0 0.0
        %1973 = vmatprep.subr.mxu0 0.0
        %1974 = vmatpush1.xpose.msra.mxu0 0.0
        %1975 = vmatprep.subr.mxu0 0.0
        %1976 = vmatpush1.xpose.msra.mxu0 0.0
        %1977 = vmatprep.subr.mxu0 0.0
        %1978 = vmatpush1.xpose.msra.mxu0 0.0
        %1979 = vmatprep.subr.mxu0 0.0
        %1980 = vmatpush1.xpose.msra.mxu0 0.0
        %1981 = vmatprep.subr.mxu0 0.0
        %1982 = vmatpush1.xpose.msra.mxu0 0.0
        %1983 = vmatprep.subr.mxu0 0.0
        %1984 = vmatpush1.xpose.msra.mxu0 0.0
        %1985 = vmatprep.subr.mxu0 0.0
        %1986 = vmatpush1.xpose.msra.mxu0 0.0
        %1987 = vmatprep.subr.mxu0 0.0
        %1988 = vmatpush1.xpose.msra.mxu0 0.0
        %1989 = vmatprep.subr.mxu0 0.0
        %1990 = vmatpush1.xpose.msra.mxu0 0.0
        %1991 = vmatprep.subr.mxu0 0.0
        %1992 = vmatpush1.xpose.msra.mxu0 0.0
        %1993 = vmatprep.subr.mxu0 0.0
        %1994 = vmatpush1.xpose.msra.mxu0 0.0
        %1995 = vmatprep.mubr.f32.mxu0 %v1924
        %1996 = vmatmul.mubr.f32.gmra.mrb[0].mxu0 %v1923
        %v1997 = vpop.f32.mrb[0].mxu0
        %v1998 = vadd.f32 0.0, %v1997
        %v1999 = vpop.f32.mrb[0].mxu0
        %2000 = vmatprep.mubr.f32.mxu0 %v1926
        %2001 = vmatmul.mubr.f32.gmra.mrb[0].mxu0 %v1925
        %v2002 = vpop.f32.mrb[0].mxu0
        %v2003 = vadd.f32 0.0, %v2002
        %v2004 = vpop.f32.mrb[0].mxu0
        %2005 = vmatprep.mubr.f32.mxu0 %v1928
        %2006 = vmatmul.mubr.f32.gmra.mrb[0].mxu0 %v1927
        %v2007 = vpop.f32.mrb[0].mxu0
        %v2008 = vadd.f32 0.0, %v2007
        %v2009 = vpop.f32.mrb[0].mxu0
        %2010 = vmatprep.mubr.f32.mxu0 %v1930
        %2011 = vmatmul.mubr.f32.gmra.mrb[0].mxu0 %v1929
        %v2012 = vpop.f32.mrb[0].mxu0
        %v2013 = vadd.f32 0.0, %v2012
        %v2014 = vpop.f32.mrb[0].mxu0
        %2015 = vdwg.mxu0
        %s2016 = scalar_lea.vmem %s301, 96
        %2017 = vst.msk [vmem:[%s2016] sm:$0xff] %vm354, %v1998
        %2018 = vst.msk [vmem:[%s2016 + $0x8] sm:$0xff] %vm354, %v2003
        %2019 = vst.msk [vmem:[%s2016 + $0x10] sm:$0xff] %vm354, %v2008
        %2020 = vst.msk [vmem:[%s2016 + $0x18] sm:$0x1] %vm778, %v2013
        %s2021 = scalar_lea.vmem %s308, 192
        %2022 = vst [vmem:[%s2021] sm:$0xff] %v1923
        %2023 = vst [vmem:[%s2021 + $0x8] sm:$0xff] %v1924
        %2024 = vst [vmem:[%s2021 + $0x10] sm:$0xff] %v1925
        %2025 = vst [vmem:[%s2021 + $0x18] sm:$0xff] %v1926
        %2026 = vst [vmem:[%s2021 + $0x20] sm:$0xff] %v1927
        %2027 = vst [vmem:[%s2021 + $0x28] sm:$0xff] %v1928
        %2028 = vst [vmem:[%s2021 + $0x30] sm:$0x1] %v1929
        %2029 = vst [vmem:[%s2021 + $0x38] sm:$0x1] %v1930
        %s2030 = smul.u32 4, %s22
        %p2031 = scmp.lt.s32.totalorder %s2030, 7
        %s2032 = scalar_select %p2031, %s2030, 7
        %s2033 = smul.addr %s2032, 4
        %s2034 = smul.addr %s2033, 8
        %s2035 = scalar_lea.vmem %s4, %s2034
        %s2036 = smul.u32 4, %s22
        %p2037 = scmp.lt.s32.totalorder %s2036, 7
        %s2038 = scalar_select %p2037, %s2036, 7
        %s2039 = smul.addr %s2038, 8
        %s2040 = smul.addr %s2039, 8
        %s2041 = scalar_lea.vmem %s5, %s2040
        // Predicated region
        $region53: #{tpu_custom_call.1} parent=35 // pred_check
          %p2042 = pneg %p129
        $region54: #{tpu_custom_call.1} parent=35 // pred_check_branch
          %2044 = sbr.rel (%p2042) target = $region56
        $region55: #{tpu_custom_call.1} parent=35 // pred_region
          %s2045 = smul.u32 4, %s22
        $region56: #{tpu_custom_call.1} parent=35 // pred_fallthru
          _
        // Predicated region
        $region57: #{tpu_custom_call.1} parent=35 // pred_check
          %p2046 = pneg %p155
        $region58: #{tpu_custom_call.1} parent=35 // pred_check_branch
          %2048 = sbr.rel (%p2046) target = $region60
        $region59: #{tpu_custom_call.1} parent=35 // pred_region
          %s2049 = smul.u32 4, %s22
        $region60: #{tpu_custom_call.1} parent=35 // pred_fallthru
          _
      $region36: #{tpu_custom_call.1} parent=5 // pred_fallthru
        _
      %p2050 = scmp.le.s32.totalorder 2, %s17
      // Predicated region
      $region61: #{tpu_custom_call.1} parent=5 // pred_check
        %p2051 = pneg %p2050
      $region62: #{tpu_custom_call.1} parent=5 // pred_check_branch
        %2053 = sbr.rel (%p2051) target = $region64
      $region63: #{tpu_custom_call.1} parent=5 // pred_region
        %s2054 = ssub.s32 %s17, 2
        // Predicated region
        $region65: #{tpu_custom_call.1} parent=63 // pred_check
          %p2055 = pneg %p135
        $region66: #{tpu_custom_call.1} parent=63 // pred_check_branch
          %2057 = sbr.rel (%p2055) target = $region68
        $region67: #{tpu_custom_call.1} parent=63 // pred_region
          %s2058 = smul.u32 4, %s23
          %p2059 = scmp.lt.s32.totalorder %s2058, 7
          %s2060 = scalar_select %p2059, %s2058, 7
          %s2061 = smul.addr %s2060, 4
          %s2062 = smul.addr %s2061, 8
          %s2063 = scalar_lea.vmem %s4, %s2062
        $region68: #{tpu_custom_call.1} parent=63 // pred_fallthru
          _
        // Predicated region
        $region69: #{tpu_custom_call.1} parent=63 // pred_check
          %p2064 = pneg %p161
        $region70: #{tpu_custom_call.1} parent=63 // pred_check_branch
          %2066 = sbr.rel (%p2064) target = $region72
        $region71: #{tpu_custom_call.1} parent=63 // pred_region
          %s2067 = smul.u32 4, %s23
          %p2068 = scmp.lt.s32.totalorder %s2067, 7
          %s2069 = scalar_select %p2068, %s2067, 7
          %s2070 = smul.addr %s2069, 8
          %s2071 = smul.addr %s2070, 8
          %s2072 = scalar_lea.vmem %s5, %s2071
        $region72: #{tpu_custom_call.1} parent=63 // pred_fallthru
          _
      $region64: #{tpu_custom_call.1} parent=5 // pred_fallthru
        _
    $region6: #{tpu_custom_call.1} parent=1 // loop_footer
      %s21 = sadd.s32 1, %s17
    $region7: #{tpu_custom_call.1} parent=1 // loop_footer_branch
      %16 = sbr.rel target = $region3
    $region8: #{tpu_custom_call.1} parent=1 // loop_exit
      _
    %2073 = vsyncpa [#allocation3], 1
    %s2074 = scalar_lea.sflag [#allocation3], 1
    %2075 = vsyncpa %s2074, 1
    %2076 = vsyncpa [#allocation5], 1
    %2077 = vsyncpa [#allocation8], 1
    %s2078 = scalar_lea.sflag [#allocation8], 1
    %2079 = vsyncpa %s2078, 1

</llo_original>
